<compile_context>
chip_gen: v7x
topology: tpu7x:2x2x1
jax: 0.10.0
libtpu: 0.0.40
codegen_flags: <defaults>
</compile_context>

<pallas_src>
import functools

import jax
import jax.numpy as jnp
from jax.experimental import pallas as pl
from jax.experimental.pallas import tpu as pltpu


# ------------------------------- helpers ------------------------------------

def _pick_tile(dim, pref, align):
    """Largest multiple-of-`align` divisor of `dim` that is <= `pref`.
    Returns the full dim when dim <= pref or no aligned divisor exists
    (a full-extent block is always a legal Pallas block)."""
    if dim <= pref:
        return dim
    t = (pref // align) * align
    while t >= align:
        if dim % t == 0:
            return t
        t -= align
    # TODO(synk): for huge non-divisible axes, padding to a tile multiple in
    # the wrapper would be safer than a full-axis block.
    return dim


@functools.lru_cache(maxsize=None)
def _vmem_limit_bytes():
    try:
        kind = jax.devices()[0].device_kind.lower()
    except Exception:  # pragma: no cover - defensive
        kind = ""
    if "v7" in kind or "tpu7" in kind or "7x" in kind:
        return 48 * 1024 * 1024    # v7x: 64 MiB physical VMEM per TensorCore
    if "v5" in kind or "v6" in kind:
        return 96 * 1024 * 1024    # v5e / v6e: 128 MiB physical VMEM
    return 32 * 1024 * 1024        # conservative default for other chips


def _cparams(dim_sem):
    return pltpu.CompilerParams(
        dimension_semantics=dim_sem,
        vmem_limit_bytes=_vmem_limit_bytes(),
    )


# ----------------------------- Pallas kernels ------------------------------

def _rmsnorm_kernel(x_ref, g_ref, o_ref):
    # T5LayerNorm: no mean subtraction, no bias. eps = 1e-6.  f32 math.
    x = x_ref[...].astype(jnp.float32)
    var = jnp.mean(x * x, axis=-1, keepdims=True)
    y = x * jax.lax.rsqrt(var + 1e-6) * g_ref[...].astype(jnp.float32)
    o_ref[...] = y.astype(o_ref.dtype)


def _rmsnorm_qkv_kernel(x_ref, g_ref, wq_ref, wk_ref, wv_ref,
                        q_ref, k_ref, v_ref):
    # Fused pre-norm + Q/K/V projection.  The x row-tile block index is
    # constant across the N grid axis so it is DMA'd once per row tile.
    # Norm in f32, matmul operands in bf16, f32 accumulation.
    x = x_ref[...].astype(jnp.float32)
    var = jnp.mean(x * x, axis=-1, keepdims=True)
    xn = (x * jax.lax.rsqrt(var + 1e-6) * g_ref[...].astype(jnp.float32))
    xn_bf = xn.astype(jnp.bfloat16)
    q_ref[...] = jnp.dot(xn_bf, wq_ref[...],
                         preferred_element_type=jnp.float32).astype(q_ref.dtype)
    k_ref[...] = jnp.dot(xn_bf, wk_ref[...],
                         preferred_element_type=jnp.float32).astype(k_ref.dtype)
    v_ref[...] = jnp.dot(xn_bf, wv_ref[...],
                         preferred_element_type=jnp.float32).astype(v_ref.dtype)


def _matmul_residual_kernel(x_ref, w_ref, r_ref, o_ref, acc_ref):
    # Tiled bf16 matmul with f32 K-reduction accumulator; residual added in
    # f32 at the last K step.  Output aliases the residual buffer.
    kk = pl.program_id(2)

    @pl.when(kk == 0)
    def _init():
        acc_ref[...] = jnp.zeros_like(acc_ref)

    acc_ref[...] += jnp.dot(x_ref[...], w_ref[...],
                            preferred_element_type=jnp.float32)

    @pl.when(kk == pl.num_programs(2) - 1)
    def _finalize():
        o_ref[...] = (acc_ref[...] + r_ref[...].astype(jnp.float32)
                      ).astype(o_ref.dtype)


def _ffn_kernel(x_ref, g_ref, wi_ref, wo_ref, o_ref, acc_ref):
    # Fused pre-norm + wi + relu + wo_ff + residual, tiled over d_ff with a
    # resident [tm, D] f32 accumulator: the [B*L, d_ff] intermediate stays in
    # VMEM.  MXU operands bf16, accumulation / norm / residual in f32.
    f = pl.program_id(1)

    @pl.when(f == 0)
    def _init():
        acc_ref[...] = jnp.zeros_like(acc_ref)

    x = x_ref[...].astype(jnp.float32)
    var = jnp.mean(x * x, axis=-1, keepdims=True)
    xn = x * jax.lax.rsqrt(var + 1e-6) * g_ref[...].astype(jnp.float32)
    h = jnp.maximum(jnp.dot(xn.astype(jnp.bfloat16), wi_ref[...],
                            preferred_element_type=jnp.float32), 0.0)
    acc_ref[...] += jnp.dot(h.astype(jnp.bfloat16), wo_ref[...],
                            preferred_element_type=jnp.float32)

    @pl.when(f == pl.num_programs(1) - 1)
    def _finalize():
        o_ref[...] = (acc_ref[...] + x).astype(o_ref.dtype)


def _flash_attn_kernel(q_ref, k_ref, v_ref, pb_ref, mk_ref, o_ref,
                       m_sc, l_sc, acc_sc, *, num_heads, d_kv):
    # Flash-style online softmax over KV tiles; all heads handled per grid
    # step so I/O stays in the wide [tq, H*d_kv] layout (lane-dense stores).
    # T5 does NOT scale scores by 1/sqrt(d_kv); bias = relative-position bias
    # (shared across batch, bf16) + additive padding mask.  QK^T and P*V run
    # in bf16 on the MXU; max/exp/sum and accumulators stay f32.
    ki = pl.program_id(2)

    @pl.when(ki == 0)
    def _init():
        m_sc[...] = jnp.full(m_sc.shape, -1e30, dtype=jnp.float32)
        l_sc[...] = jnp.zeros(l_sc.shape, dtype=jnp.float32)
        acc_sc[...] = jnp.zeros(acc_sc.shape, dtype=jnp.float32)

    q = q_ref[0]                                  # [tq, H*dk]  bf16
    k = k_ref[0]                                  # [tk, H*dk]  bf16
    v = v_ref[0]                                  # [tk, H*dk]  bf16
    mask = mk_ref[0].astype(jnp.float32)          # [1, tk] additive (0 / -1e9)

    def one_head(h, qh, kh, vh, pb_h):
        s = jax.lax.dot_general(qh, kh, (((1,), (1,)), ((), ())),
                                preferred_element_type=jnp.float32)  # [tq, tk]
        s = s + pb_h + mask
        m_prev = m_sc[h]                                             # [tq, 1]
        m_new = jnp.maximum(m_prev, jnp.max(s, axis=-1, keepdims=True))
        alpha = jnp.exp(m_prev - m_new)
        p = jnp.exp(s - m_new)
        l_sc[h] = alpha * l_sc[h] + jnp.sum(p, axis=-1, keepdims=True)
        acc_sc[h] = alpha * acc_sc[h] + jnp.dot(
            p.astype(jnp.bfloat16), vh, preferred_element_type=jnp.float32)
        m_sc[h] = m_new

    if num_heads <= 12:
        # static unroll: cheapest for small/medium head counts
        for h in range(num_heads):
            lo = h * d_kv
            one_head(h, q[:, lo:lo + d_kv], k[:, lo:lo + d_kv],
                     v[:, lo:lo + d_kv], pb_ref[h].astype(jnp.float32))
    else:
        # many-head variants: bound live ranges / compile time with fori_loop
        def body(h, carry):
            lo = h * d_kv
            qh = jax.lax.dynamic_slice_in_dim(q, lo, d_kv, axis=1)
            kh = jax.lax.dynamic_slice_in_dim(k, lo, d_kv, axis=1)
            vh = jax.lax.dynamic_slice_in_dim(v, lo, d_kv, axis=1)
            one_head(h, qh, kh, vh, pb_ref[h].astype(jnp.float32))
            return carry
        jax.lax.fori_loop(0, num_heads, body, 0)

    @pl.when(ki == pl.num_programs(2) - 1)
    def _finalize():
        pieces = []
        for h in range(num_heads):
            inv_l = pl.reciprocal(l_sc[h], approx=False)
            pieces.append(acc_sc[h] * inv_l)
        # single lane-dense store of all heads (once per q tile)
        o_ref[0] = jnp.concatenate(pieces, axis=-1).astype(o_ref.dtype)


# ------------------------------- wrappers -----------------------------------

def pallas_rmsnorm(x, g, tm=512):
    M, D = x.shape
    tm = _pick_tile(M, tm, 8)
    return pl.pallas_call(
        _rmsnorm_kernel,
        out_shape=jax.ShapeDtypeStruct((M, D), x.dtype),
        grid=(M // tm,),
        in_specs=[pl.BlockSpec((tm, D), lambda i: (i, 0)),
                  pl.BlockSpec((1, D), lambda i: (0, 0))],
        out_specs=pl.BlockSpec((tm, D), lambda i: (i, 0)),
        compiler_params=_cparams(("parallel",)),
    )(x, g.reshape(1, D))


def pallas_rmsnorm_qkv(x, g, wq, wk, wv, tm=512, tn=256):
    M, D = x.shape
    N = wq.shape[1]
    tm = _pick_tile(M, tm, 8)
    tn = _pick_tile(N, tn, 128)
    out_sd = jax.ShapeDtypeStruct((M, N), jnp.bfloat16)
    return pl.pallas_call(
        _rmsnorm_qkv_kernel,
        out_shape=(out_sd, out_sd, out_sd),
        grid=(M // tm, N // tn),
        in_specs=[pl.BlockSpec((tm, D), lambda i, j: (i, 0)),
                  pl.BlockSpec((1, D), lambda i, j: (0, 0)),
                  pl.BlockSpec((D, tn), lambda i, j: (0, j)),
                  pl.BlockSpec((D, tn), lambda i, j: (0, j)),
                  pl.BlockSpec((D, tn), lambda i, j: (0, j))],
        out_specs=(pl.BlockSpec((tm, tn), lambda i, j: (i, j)),
                   pl.BlockSpec((tm, tn), lambda i, j: (i, j)),
                   pl.BlockSpec((tm, tn), lambda i, j: (i, j))),
        compiler_params=_cparams(("parallel", "parallel")),
    )(x, g.reshape(1, D), wq, wk, wv)


def pallas_matmul_residual(x, w, r, tm=512, tn=256, tk=512):
    M, K = x.shape
    _, N = w.shape
    tm = _pick_tile(M, tm, 8)
    tn = _pick_tile(N, tn, 128)
    tk = _pick_tile(K, tk, 128)
    return pl.pallas_call(
        _matmul_residual_kernel,
        out_shape=jax.ShapeDtypeStruct((M, N), r.dtype),
        grid=(M // tm, N // tn, K // tk),
        in_specs=[pl.BlockSpec((tm, tk), lambda i, j, kk: (i, kk)),
                  pl.BlockSpec((tk, tn), lambda i, j, kk: (kk, j)),
                  pl.BlockSpec((tm, tn), lambda i, j, kk: (i, j))],
        out_specs=pl.BlockSpec((tm, tn), lambda i, j, kk: (i, j)),
        scratch_shapes=[pltpu.VMEM((tm, tn), jnp.float32)],
        compiler_params=_cparams(("parallel", "parallel", "arbitrary")),
        input_output_aliases={2: 0},   # write output in place of the residual
    )(x, w, r)


def pallas_ffn(x, g, wi, wo, tm=512, tf=512):
    M, D = x.shape
    F = wi.shape[1]
    tm = _pick_tile(M, tm, 8)
    tf = _pick_tile(F, tf, 128)
    return pl.pallas_call(
        _ffn_kernel,
        out_shape=jax.ShapeDtypeStruct((M, D), x.dtype),
        grid=(M // tm, F // tf),
        in_specs=[pl.BlockSpec((tm, D), lambda i, f: (i, 0)),
                  pl.BlockSpec((1, D), lambda i, f: (0, 0)),
                  pl.BlockSpec((D, tf), lambda i, f: (0, f)),
                  pl.BlockSpec((tf, D), lambda i, f: (f, 0))],
        out_specs=pl.BlockSpec((tm, D), lambda i, f: (i, 0)),
        scratch_shapes=[pltpu.VMEM((tm, D), jnp.float32)],
        compiler_params=_cparams(("parallel", "arbitrary")),
        input_output_aliases={0: 0},   # write output in place of the residual
    )(x, g.reshape(1, D), wi, wo)


def pallas_flash_attention(q, k, v, pos_bias, mask_bias, *, num_heads, d_kv,
                           tq=256, tk=256):
    B, L, HD = q.shape
    H = num_heads
    tq = _pick_tile(L, tq, 8)     # sublane-aligned query tile
    tk = _pick_tile(L, tk, 128)   # lane-aligned KV tile (pos-bias last dim)
    kernel = functools.partial(_flash_attn_kernel, num_heads=H, d_kv=d_kv)
    return pl.pallas_call(
        kernel,
        out_shape=jax.ShapeDtypeStruct((B, L, HD), q.dtype),
        grid=(B, L // tq, L // tk),
        in_specs=[pl.BlockSpec((1, tq, HD), lambda b, qi, ki: (b, qi, 0)),
                  pl.BlockSpec((1, tk, HD), lambda b, qi, ki: (b, ki, 0)),
                  pl.BlockSpec((1, tk, HD), lambda b, qi, ki: (b, ki, 0)),
                  pl.BlockSpec((H, tq, tk), lambda b, qi, ki: (0, qi, ki)),
                  pl.BlockSpec((1, 1, tk), lambda b, qi, ki: (b, 0, ki))],
        out_specs=pl.BlockSpec((1, tq, HD), lambda b, qi, ki: (b, qi, 0)),
        scratch_shapes=[pltpu.VMEM((H, tq, 1), jnp.float32),      # running max
                        pltpu.VMEM((H, tq, 1), jnp.float32),      # running sum
                        pltpu.VMEM((H, tq, d_kv), jnp.float32)],  # acc
        compiler_params=_cparams(("parallel", "parallel", "arbitrary")),
    )(q, k, v, pos_bias, mask_bias)


# --------------------------- T5 encoder (glue) ------------------------------

def _relative_position_bucket(relative_position, num_buckets, max_distance):
    # Bidirectional bucketization, as in HF T5Attention._relative_position_bucket.
    num_buckets = num_buckets // 2
    relative_buckets = (relative_position > 0).astype(jnp.int32) * num_buckets
    relative_position = jnp.abs(relative_position)
    max_exact = num_buckets // 2
    is_small = relative_position < max_exact
    rp = jnp.maximum(relative_position, 1).astype(jnp.float32)
    relative_position_if_large = max_exact + (
        jnp.log(rp / max_exact) / jnp.log(max_distance / max_exact)
        * (num_buckets - max_exact)
    ).astype(jnp.int32)
    relative_position_if_large = jnp.minimum(relative_position_if_large,
                                             num_buckets - 1)
    relative_buckets = relative_buckets + jnp.where(
        is_small, relative_position, relative_position_if_large)
    return relative_buckets


def _compute_position_bias(rel_attn_bias, L, num_buckets, max_distance):
    context_position = jnp.arange(L)[:, None]
    memory_position = jnp.arange(L)[None, :]
    relative_position = memory_position - context_position          # [L, L]
    rp_bucket = _relative_position_bucket(relative_position,
                                          num_buckets, max_distance)
    values = jnp.take(rel_attn_bias, rp_bucket, axis=0)             # [L, L, H]
    return jnp.transpose(values, (2, 0, 1)).astype(jnp.float32)     # [H, L, L]


def t5_encoder_forward(params, input_ids, attention_mask, cfg):
    B, L = input_ids.shape
    D, H, dk = cfg["d_model"], cfg["num_heads"], cfg["d_kv"]
    HD = H * dk

    hidden = jnp.take(params["embedding"], input_ids, axis=0)       # [B, L, D] f32

    # Additive mask shared across heads/queries: [B, 1, L] (0 keep, -1e9 pad).
    mask_bias = ((1.0 - attention_mask.astype(jnp.float32)) * -1e9)[:, None, :]
    mask_bias = mask_bias.astype(jnp.bfloat16)
    # Relative-position bias shared across the batch: [H, L, L] (bf16 stream).
    pos_bias = _compute_position_bias(params["rel_attn_bias"], L,
                                      cfg["num_buckets"], cfg["max_distance"])
    pos_bias = pos_bias.astype(jnp.bfloat16)

    for layer in params["layers"]:
        # ---- self-attention: fused norm+QKV, flash attn, out-proj+residual ----
        x = hidden.reshape(B * L, D)
        q, k, v = pallas_rmsnorm_qkv(x, layer["ln0"],
                                     layer["wq"], layer["wk"], layer["wv"])
        ctx = pallas_flash_attention(q.reshape(B, L, HD), k.reshape(B, L, HD),
                                     v.reshape(B, L, HD), pos_bias, mask_bias,
                                     num_heads=H, d_kv=dk)           # [B, L, H*dk] bf16
        hidden = pallas_matmul_residual(ctx.reshape(B * L, HD),
                                        layer["wo"], x).reshape(B, L, D)

        # ---- feed-forward: fused norm + wi + relu + wo_ff + residual ----
        hidden = pallas_ffn(hidden.reshape(B * L, D), layer["ln1"],
                            layer["wi"], layer["wo_ff"]).reshape(B, L, D)

    # TODO(synk): dropout layers are identity in frozen/eval mode and are omitted.
    x = hidden.reshape(B * L, D)
    return pallas_rmsnorm(x, params["final_ln"]).reshape(B, L, D)    # last_hidden_state


# ------------------------------ param init ----------------------------------

def init_params(key, cfg):
    D, H, dk, dff = cfg["d_model"], cfg["num_heads"], cfg["d_kv"], cfg["d_ff"]
    ks = iter(jax.random.split(key, 4 + 6 * cfg["num_layers"]))

    def w(shape, scale=0.02, dtype=jnp.bfloat16):
        return (scale * jax.random.normal(next(ks), shape)).astype(dtype)

    params = {
        "embedding": w((cfg["vocab_size"], D), scale=1.0, dtype=jnp.float32),
        "rel_attn_bias": w((cfg["num_buckets"], H), dtype=jnp.float32),
        "final_ln": jnp.ones((D,), jnp.float32),
        "layers": [],
    }
    for _ in range(cfg["num_layers"]):
        params["layers"].append({
            "ln0": jnp.ones((D,), jnp.float32),
            "wq": w((D, H * dk)), "wk": w((D, H * dk)), "wv": w((D, H * dk)),
            "wo": w((H * dk, D)),
            "ln1": jnp.ones((D,), jnp.float32),
            "wi": w((D, dff)), "wo_ff": w((dff, D)),
        })
    return params


# --------------------------------- main --------------------------------------

if __name__ == "__main__":
    cfg = dict(vocab_size=100, d_model=32, d_kv=8, num_heads=4, d_ff=64,
               num_layers=2, num_buckets=32, max_distance=128)

    key = jax.random.PRNGKey(0)
    k_param, k_ids = jax.random.split(key)
    params = init_params(k_param, cfg)

    B, L = 2, 8
    input_ids = jax.random.randint(k_ids, (B, L), 0, cfg["vocab_size"], jnp.int32)
    attention_mask = jnp.array([[1, 1, 1, 1, 1, 1, 1, 1],
                                [1, 1, 1, 1, 1, 1, 0, 0]], jnp.int32)

    fwd = jax.jit(functools.partial(t5_encoder_forward, cfg=cfg))
    out = fwd(params, input_ids, attention_mask)
    out = jax.block_until_ready(out)

    assert out.shape == (B, L, cfg["d_model"])
    assert bool(jnp.all(jnp.isfinite(out)))
    print("KERNEL_OK")
</pallas_src>

<mosaic_0001>
module attributes {stable_mosaic.version = 11 : i64} {
  func.func @_rmsnorm_qkv_kernel(%arg0: i32, %arg1: i32, %arg2: memref<16x32xf32, #tpu.memory_space<vmem>>, %arg3: memref<1x32xf32, #tpu.memory_space<vmem>>, %arg4: memref<32x32xbf16, #tpu.memory_space<vmem>>, %arg5: memref<32x32xbf16, #tpu.memory_space<vmem>>, %arg6: memref<32x32xbf16, #tpu.memory_space<vmem>>, %arg7: memref<16x32xbf16, #tpu.memory_space<vmem>>, %arg8: memref<16x32xbf16, #tpu.memory_space<vmem>>, %arg9: memref<16x32xbf16, #tpu.memory_space<vmem>>) attributes {dimension_semantics = [#tpu.dimension_semantics<parallel>, #tpu.dimension_semantics<parallel>], iteration_bounds = array<i64: 1, 1>, scalar_prefetch = 0 : i64, scratch_operands = 0 : i64, tpu.core_type = #tpu.core_type<tc>, window_params = [{transform_indices = @transform_0, window_bounds = array<i64: 16, 32>}, {pipeline_mode = #tpu.pipeline_mode<synchronous>, transform_indices = @transform_1, window_bounds = array<i64: 1, 32>}, {transform_indices = @transform_2, window_bounds = array<i64: 32, 32>}, {transform_indices = @transform_3, window_bounds = array<i64: 32, 32>}, {transform_indices = @transform_4, window_bounds = array<i64: 32, 32>}, {transform_indices = @transform_5, window_bounds = array<i64: 16, 32>}, {transform_indices = @transform_6, window_bounds = array<i64: 16, 32>}, {transform_indices = @transform_7, window_bounds = array<i64: 16, 32>}]} {
    %c0 = arith.constant 0 : index
    %c0_0 = arith.constant 0 : index
    %0 = vector.load %arg2[%c0, %c0_0] : memref<16x32xf32, #tpu.memory_space<vmem>>, vector<16x32xf32>
    %1 = arith.mulf %0, %0 : vector<16x32xf32>
    %cst = arith.constant dense<0.000000e+00> : vector<16xf32>
    %2 = vector.multi_reduction <add>, %1, %cst [1] : vector<16x32xf32> to vector<16xf32>
    %3 = vector.shape_cast %2 : vector<16xf32> to vector<16x1xf32>
    %cst_1 = arith.constant 3.200000e+01 : f32
    %4 = vector.broadcast %cst_1 : f32 to vector<16x1xf32>
    %5 = arith.divf %3, %4 : vector<16x1xf32>
    %cst_2 = arith.constant 9.99999997E-7 : f32
    %6 = vector.broadcast %cst_2 : f32 to vector<16x1xf32>
    %7 = arith.addf %5, %6 : vector<16x1xf32>
    %8 = math.rsqrt %7 : vector<16x1xf32>
    %9 = vector.broadcast %8 : vector<16x1xf32> to vector<16x32xf32>
    %10 = arith.mulf %0, %9 : vector<16x32xf32>
    %c0_3 = arith.constant 0 : index
    %c0_4 = arith.constant 0 : index
    %11 = vector.load %arg3[%c0_3, %c0_4] : memref<1x32xf32, #tpu.memory_space<vmem>>, vector<1x32xf32>
    %12 = vector.broadcast %11 : vector<1x32xf32> to vector<16x32xf32>
    %13 = arith.mulf %10, %12 : vector<16x32xf32>
    %14 = arith.truncf %13 : vector<16x32xf32> to vector<16x32xbf16>
    %c0_5 = arith.constant 0 : index
    %c0_6 = arith.constant 0 : index
    %15 = vector.load %arg4[%c0_5, %c0_6] : memref<32x32xbf16, #tpu.memory_space<vmem>>, vector<32x32xbf16>
    %cst_7 = arith.constant dense<0.000000e+00> : vector<16x32xf32>
    %16 = tpu.matmul %14, %15, %cst_7 {dimension_numbers = #tpu.dot_dimension_numbers<[1], [0], [0], [1], [0, 0, 1, 1], [], []>} : vector<16x32xbf16>, vector<32x32xbf16>, vector<16x32xf32> -> vector<16x32xf32>
    %17 = arith.truncf %16 : vector<16x32xf32> to vector<16x32xbf16>
    %c0_8 = arith.constant 0 : index
    %c0_9 = arith.constant 0 : index
    %18 = vector.load %arg7[%c0_8, %c0_9] : memref<16x32xbf16, #tpu.memory_space<vmem>>, vector<16x32xbf16>
    tpu.vector_store %arg7[%c0_8, %c0_9], %17 {strides = array<i32>} : memref<16x32xbf16, #tpu.memory_space<vmem>>, vector<16x32xbf16>,
    %c0_10 = arith.constant 0 : index
    %c0_11 = arith.constant 0 : index
    %19 = vector.load %arg5[%c0_10, %c0_11] : memref<32x32xbf16, #tpu.memory_space<vmem>>, vector<32x32xbf16>
    %cst_12 = arith.constant dense<0.000000e+00> : vector<16x32xf32>
    %20 = tpu.matmul %14, %19, %cst_12 {dimension_numbers = #tpu.dot_dimension_numbers<[1], [0], [0], [1], [0, 0, 1, 1], [], []>} : vector<16x32xbf16>, vector<32x32xbf16>, vector<16x32xf32> -> vector<16x32xf32>
    %21 = arith.truncf %20 : vector<16x32xf32> to vector<16x32xbf16>
    %c0_13 = arith.constant 0 : index
    %c0_14 = arith.constant 0 : index
    %22 = vector.load %arg8[%c0_13, %c0_14] : memref<16x32xbf16, #tpu.memory_space<vmem>>, vector<16x32xbf16>
    tpu.vector_store %arg8[%c0_13, %c0_14], %21 {strides = array<i32>} : memref<16x32xbf16, #tpu.memory_space<vmem>>, vector<16x32xbf16>,
    %c0_15 = arith.constant 0 : index
    %c0_16 = arith.constant 0 : index
    %23 = vector.load %arg6[%c0_15, %c0_16] : memref<32x32xbf16, #tpu.memory_space<vmem>>, vector<32x32xbf16>
    %cst_17 = arith.constant dense<0.000000e+00> : vector<16x32xf32>
    %24 = tpu.matmul %14, %23, %cst_17 {dimension_numbers = #tpu.dot_dimension_numbers<[1], [0], [0], [1], [0, 0, 1, 1], [], []>} : vector<16x32xbf16>, vector<32x32xbf16>, vector<16x32xf32> -> vector<16x32xf32>
    %25 = arith.truncf %24 : vector<16x32xf32> to vector<16x32xbf16>
    %c0_18 = arith.constant 0 : index
    %c0_19 = arith.constant 0 : index
    %26 = vector.load %arg9[%c0_18, %c0_19] : memref<16x32xbf16, #tpu.memory_space<vmem>>, vector<16x32xbf16>
    tpu.vector_store %arg9[%c0_18, %c0_19], %25 {strides = array<i32>} : memref<16x32xbf16, #tpu.memory_space<vmem>>, vector<16x32xbf16>,
    return
  }
  func.func @transform_0(%arg0: i32, %arg1: i32) -> (i32, i32) {
    %c0_i32 = arith.constant 0 : i32
    %c0_i32_0 = arith.constant 0 : i32
    return %arg0, %c0_i32 : i32, i32
  }
  func.func @transform_1(%arg0: i32, %arg1: i32) -> (i32, i32) {
    %c0_i32 = arith.constant 0 : i32
    %c0_i32_0 = arith.constant 0 : i32
    %c0_i32_1 = arith.constant 0 : i32
    return %c0_i32, %c0_i32_0 : i32, i32
  }
  func.func @transform_2(%arg0: i32, %arg1: i32) -> (i32, i32) {
    %c0_i32 = arith.constant 0 : i32
    %c0_i32_0 = arith.constant 0 : i32
    return %c0_i32, %arg1 : i32, i32
  }
  func.func @transform_3(%arg0: i32, %arg1: i32) -> (i32, i32) {
    %c0_i32 = arith.constant 0 : i32
    %c0_i32_0 = arith.constant 0 : i32
    return %c0_i32, %arg1 : i32, i32
  }
  func.func @transform_4(%arg0: i32, %arg1: i32) -> (i32, i32) {
    %c0_i32 = arith.constant 0 : i32
    %c0_i32_0 = arith.constant 0 : i32
    return %c0_i32, %arg1 : i32, i32
  }
  func.func @transform_5(%arg0: i32, %arg1: i32) -> (i32, i32) {
    %c0_i32 = arith.constant 0 : i32
    return %arg0, %arg1 : i32, i32
  }
  func.func @transform_6(%arg0: i32, %arg1: i32) -> (i32, i32) {
    %c0_i32 = arith.constant 0 : i32
    return %arg0, %arg1 : i32, i32
  }
  func.func @transform_7(%arg0: i32, %arg1: i32) -> (i32, i32) {
    %c0_i32 = arith.constant 0 : i32
    return %arg0, %arg1 : i32, i32
  }
}

module attributes {stable_mosaic.version = 11 : i64} {
  func.func @_matmul_residual_kernel(%arg0: i32, %arg1: i32, %arg2: i32, %arg3: memref<16x32xbf16, #tpu.memory_space<vmem>>, %arg4: memref<32x32xbf16, #tpu.memory_space<vmem>>, %arg5: memref<16x32xf32, #tpu.memory_space<vmem>>, %arg6: memref<16x32xf32, #tpu.memory_space<vmem>>, %arg7: memref<16x32xf32, #tpu.memory_space<vmem>>) attributes {dimension_semantics = [#tpu.dimension_semantics<parallel>, #tpu.dimension_semantics<parallel>, #tpu.dimension_semantics<arbitrary>], iteration_bounds = array<i64: 1, 1, 1>, scalar_prefetch = 0 : i64, scratch_operands = 1 : i64, tpu.core_type = #tpu.core_type<tc>, window_params = [{transform_indices = @transform_0, window_bounds = array<i64: 16, 32>}, {transform_indices = @transform_1, window_bounds = array<i64: 32, 32>}, {transform_indices = @transform_2, window_bounds = array<i64: 16, 32>}, {transform_indices = @transform_3, window_bounds = array<i64: 16, 32>}]} {
    %c0_i32 = arith.constant 0 : i32
    %0 = arith.cmpi eq, %arg2, %c0_i32 : i32
    %1 = arith.extui %0 : i1 to i32
    %c0_i32_0 = arith.constant 0 : i32
    %2 = arith.cmpi ne, %1, %c0_i32_0 : i32
    scf.if %2 {
      %cst_10 = arith.constant 0.000000e+00 : f32
      %12 = vector.broadcast %cst_10 : f32 to vector<16x32xf32>
      %c0_11 = arith.constant 0 : index
      %c0_12 = arith.constant 0 : index
      %13 = vector.load %arg7[%c0_11, %c0_12] : memref<16x32xf32, #tpu.memory_space<vmem>>, vector<16x32xf32>
      tpu.vector_store %arg7[%c0_11, %c0_12], %12 {strides = array<i32>} : memref<16x32xf32, #tpu.memory_space<vmem>>, vector<16x32xf32>,
    } else {
    }
    %c0 = arith.constant 0 : index
    %c0_1 = arith.constant 0 : index
    %3 = vector.load %arg7[%c0, %c0_1] : memref<16x32xf32, #tpu.memory_space<vmem>>, vector<16x32xf32>
    %c0_2 = arith.constant 0 : index
    %c0_3 = arith.constant 0 : index
    %4 = vector.load %arg3[%c0_2, %c0_3] : memref<16x32xbf16, #tpu.memory_space<vmem>>, vector<16x32xbf16>
    %c0_4 = arith.constant 0 : index
    %c0_5 = arith.constant 0 : index
    %5 = vector.load %arg4[%c0_4, %c0_5] : memref<32x32xbf16, #tpu.memory_space<vmem>>, vector<32x32xbf16>
    %cst = arith.constant dense<0.000000e+00> : vector<16x32xf32>
    %6 = tpu.matmul %4, %5, %cst {dimension_numbers = #tpu.dot_dimension_numbers<[1], [0], [0], [1], [0, 0, 1, 1], [], []>} : vector<16x32xbf16>, vector<32x32xbf16>, vector<16x32xf32> -> vector<16x32xf32>
    %7 = arith.addf %3, %6 : vector<16x32xf32>
    %c0_6 = arith.constant 0 : index
    %c0_7 = arith.constant 0 : index
    %8 = vector.load %arg7[%c0_6, %c0_7] : memref<16x32xf32, #tpu.memory_space<vmem>>, vector<16x32xf32>
    tpu.vector_store %arg7[%c0_6, %c0_7], %7 {strides = array<i32>} : memref<16x32xf32, #tpu.memory_space<vmem>>, vector<16x32xf32>,
    %c0_i32_8 = arith.constant 0 : i32
    %9 = arith.cmpi eq, %arg2, %c0_i32_8 : i32
    %10 = arith.extui %9 : i1 to i32
    %c0_i32_9 = arith.constant 0 : i32
    %11 = arith.cmpi ne, %10, %c0_i32_9 : i32
    scf.if %11 {
      %c0_10 = arith.constant 0 : index
      %c0_11 = arith.constant 0 : index
      %12 = vector.load %arg7[%c0_10, %c0_11] : memref<16x32xf32, #tpu.memory_space<vmem>>, vector<16x32xf32>
      %c0_12 = arith.constant 0 : index
      %c0_13 = arith.constant 0 : index
      %13 = vector.load %arg5[%c0_12, %c0_13] : memref<16x32xf32, #tpu.memory_space<vmem>>, vector<16x32xf32>
      %14 = arith.addf %12, %13 : vector<16x32xf32>
      %c0_14 = arith.constant 0 : index
      %c0_15 = arith.constant 0 : index
      %15 = vector.load %arg6[%c0_14, %c0_15] : memref<16x32xf32, #tpu.memory_space<vmem>>, vector<16x32xf32>
      tpu.vector_store %arg6[%c0_14, %c0_15], %14 {strides = array<i32>} : memref<16x32xf32, #tpu.memory_space<vmem>>, vector<16x32xf32>,
    } else {
    }
    return
  }
  func.func @transform_0(%arg0: i32, %arg1: i32, %arg2: i32) -> (i32, i32) {
    %c0_i32 = arith.constant 0 : i32
    return %arg0, %arg2 : i32, i32
  }
  func.func @transform_1(%arg0: i32, %arg1: i32, %arg2: i32) -> (i32, i32) {
    %c0_i32 = arith.constant 0 : i32
    return %arg2, %arg1 : i32, i32
  }
  func.func @transform_2(%arg0: i32, %arg1: i32, %arg2: i32) -> (i32, i32) {
    %c0_i32 = arith.constant 0 : i32
    return %arg0, %arg1 : i32, i32
  }
  func.func @transform_3(%arg0: i32, %arg1: i32, %arg2: i32) -> (i32, i32) {
    %c0_i32 = arith.constant 0 : i32
    return %arg0, %arg1 : i32, i32
  }
}

module attributes {stable_mosaic.version = 11 : i64} {
  func.func @_flash_attn_kernel(%arg0: i32, %arg1: i32, %arg2: i32, %arg3: memref<1x8x32xbf16, #tpu.memory_space<vmem>>, %arg4: memref<1x8x32xbf16, #tpu.memory_space<vmem>>, %arg5: memref<1x8x32xbf16, #tpu.memory_space<vmem>>, %arg6: memref<4x8x8xbf16, #tpu.memory_space<vmem>>, %arg7: memref<1x1x8xbf16, #tpu.memory_space<vmem>>, %arg8: memref<1x8x32xbf16, #tpu.memory_space<vmem>>, %arg9: memref<4x8x1xf32, #tpu.memory_space<vmem>>, %arg10: memref<4x8x1xf32, #tpu.memory_space<vmem>>, %arg11: memref<4x8x8xf32, #tpu.memory_space<vmem>>) attributes {dimension_semantics = [#tpu.dimension_semantics<parallel>, #tpu.dimension_semantics<parallel>, #tpu.dimension_semantics<arbitrary>], iteration_bounds = array<i64: 2, 1, 1>, scalar_prefetch = 0 : i64, scratch_operands = 3 : i64, tpu.core_type = #tpu.core_type<tc>, window_params = [{transform_indices = @transform_0, window_bounds = array<i64: 1, 8, 32>}, {transform_indices = @transform_1, window_bounds = array<i64: 1, 8, 32>}, {transform_indices = @transform_2, window_bounds = array<i64: 1, 8, 32>}, {transform_indices = @transform_3, window_bounds = array<i64: 4, 8, 8>}, {transform_indices = @transform_4, window_bounds = array<i64: 1, 1, 8>}, {transform_indices = @transform_5, window_bounds = array<i64: 1, 8, 32>}]} {
    %c0_i32 = arith.constant 0 : i32
    %0 = arith.cmpi eq, %arg2, %c0_i32 : i32
    %1 = arith.extui %0 : i1 to i32
    %c0_i32_0 = arith.constant 0 : i32
    %2 = arith.cmpi ne, %1, %c0_i32_0 : i32
    scf.if %2 {
      %cst_110 = arith.constant -1.000000e+30 : f32
      %183 = vector.broadcast %cst_110 : f32 to vector<4x8x1xf32>
      %c0_111 = arith.constant 0 : index
      %c0_112 = arith.constant 0 : index
      %c0_113 = arith.constant 0 : index
      %184 = vector.load %arg9[%c0_111, %c0_112, %c0_113] : memref<4x8x1xf32, #tpu.memory_space<vmem>>, vector<4x8x1xf32>
      tpu.vector_store %arg9[%c0_111, %c0_112, %c0_113], %183 {strides = array<i32>} : memref<4x8x1xf32, #tpu.memory_space<vmem>>, vector<4x8x1xf32>,
      %cst_114 = arith.constant 0.000000e+00 : f32
      %185 = vector.broadcast %cst_114 : f32 to vector<4x8x1xf32>
      %c0_115 = arith.constant 0 : index
      %c0_116 = arith.constant 0 : index
      %c0_117 = arith.constant 0 : index
      %186 = vector.load %arg10[%c0_115, %c0_116, %c0_117] : memref<4x8x1xf32, #tpu.memory_space<vmem>>, vector<4x8x1xf32>
      tpu.vector_store %arg10[%c0_115, %c0_116, %c0_117], %185 {strides = array<i32>} : memref<4x8x1xf32, #tpu.memory_space<vmem>>, vector<4x8x1xf32>,
      %cst_118 = arith.constant 0.000000e+00 : f32
      %187 = vector.broadcast %cst_118 : f32 to vector<4x8x8xf32>
      %c0_119 = arith.constant 0 : index
      %c0_120 = arith.constant 0 : index
      %c0_121 = arith.constant 0 : index
      %188 = vector.load %arg11[%c0_119, %c0_120, %c0_121] : memref<4x8x8xf32, #tpu.memory_space<vmem>>, vector<4x8x8xf32>
      tpu.vector_store %arg11[%c0_119, %c0_120, %c0_121], %187 {strides = array<i32>} : memref<4x8x8xf32, #tpu.memory_space<vmem>>, vector<4x8x8xf32>,
    } else {
    }
    %c0 = arith.constant 0 : index
    %c0_1 = arith.constant 0 : index
    %c0_2 = arith.constant 0 : index
    %3 = vector.load %arg3[%c0, %c0_1, %c0_2] : memref<1x8x32xbf16, #tpu.memory_space<vmem>>, vector<1x8x32xbf16>
    %4 = vector.shape_cast %3 : vector<1x8x32xbf16> to vector<8x32xbf16>
    %c0_3 = arith.constant 0 : index
    %c0_4 = arith.constant 0 : index
    %c0_5 = arith.constant 0 : index
    %5 = vector.load %arg4[%c0_3, %c0_4, %c0_5] : memref<1x8x32xbf16, #tpu.memory_space<vmem>>, vector<1x8x32xbf16>
    %6 = vector.shape_cast %5 : vector<1x8x32xbf16> to vector<8x32xbf16>
    %c0_6 = arith.constant 0 : index
    %c0_7 = arith.constant 0 : index
    %c0_8 = arith.constant 0 : index
    %7 = vector.load %arg5[%c0_6, %c0_7, %c0_8] : memref<1x8x32xbf16, #tpu.memory_space<vmem>>, vector<1x8x32xbf16>
    %8 = vector.shape_cast %7 : vector<1x8x32xbf16> to vector<8x32xbf16>
    %c0_9 = arith.constant 0 : index
    %c0_10 = arith.constant 0 : index
    %c0_11 = arith.constant 0 : index
    %9 = vector.load %arg7[%c0_9, %c0_10, %c0_11] : memref<1x1x8xbf16, #tpu.memory_space<vmem>>, vector<1x1x8xbf16>
    %10 = vector.shape_cast %9 : vector<1x1x8xbf16> to vector<1x8xbf16>
    %11 = arith.extf %10 : vector<1x8xbf16> to vector<1x8xf32>
    %12 = vector.extract_strided_slice %4 {offsets = [0, 0], sizes = [8, 8], strides = [1, 1]} : vector<8x32xbf16> to vector<8x8xbf16>
    %13 = vector.extract_strided_slice %6 {offsets = [0, 0], sizes = [8, 8], strides = [1, 1]} : vector<8x32xbf16> to vector<8x8xbf16>
    %14 = vector.extract_strided_slice %8 {offsets = [0, 0], sizes = [8, 8], strides = [1, 1]} : vector<8x32xbf16> to vector<8x8xbf16>
    %c0_12 = arith.constant 0 : index
    %c0_13 = arith.constant 0 : index
    %c0_14 = arith.constant 0 : index
    %15 = vector.load %arg6[%c0_12, %c0_13, %c0_14] : memref<4x8x8xbf16, #tpu.memory_space<vmem>>, vector<1x8x8xbf16>
    %16 = vector.shape_cast %15 : vector<1x8x8xbf16> to vector<8x8xbf16>
    %17 = arith.extf %16 : vector<8x8xbf16> to vector<8x8xf32>
    %cst = arith.constant dense<0.000000e+00> : vector<8x8xf32>
    %18 = tpu.matmul %12, %13, %cst {dimension_numbers = #tpu.dot_dimension_numbers<[1], [1], [0], [0], [0, 0, 1, 0], [], []>} : vector<8x8xbf16>, vector<8x8xbf16>, vector<8x8xf32> -> vector<8x8xf32>
    %19 = arith.addf %18, %17 : vector<8x8xf32>
    %20 = vector.broadcast %11 : vector<1x8xf32> to vector<8x8xf32>
    %21 = arith.addf %19, %20 : vector<8x8xf32>
    %c0_15 = arith.constant 0 : index
    %c0_16 = arith.constant 0 : index
    %c0_17 = arith.constant 0 : index
    %22 = vector.load %arg9[%c0_15, %c0_16, %c0_17] : memref<4x8x1xf32, #tpu.memory_space<vmem>>, vector<1x8x1xf32>
    %23 = vector.shape_cast %22 : vector<1x8x1xf32> to vector<8x1xf32>
    %cst_18 = arith.constant dense<0xFF800000> : vector<8xf32>
    %24 = vector.multi_reduction <maximumf>, %21, %cst_18 [1] : vector<8x8xf32> to vector<8xf32>
    %25 = vector.shape_cast %24 : vector<8xf32> to vector<8x1xf32>
    %26 = arith.maximumf %23, %25 : vector<8x1xf32>
    %27 = arith.subf %23, %26 : vector<8x1xf32>
    %28 = math.exp %27 : vector<8x1xf32>
    %29 = vector.broadcast %26 : vector<8x1xf32> to vector<8x8xf32>
    %30 = arith.subf %21, %29 : vector<8x8xf32>
    %31 = math.exp %30 : vector<8x8xf32>
    %c0_19 = arith.constant 0 : index
    %c0_20 = arith.constant 0 : index
    %c0_21 = arith.constant 0 : index
    %32 = vector.load %arg10[%c0_19, %c0_20, %c0_21] : memref<4x8x1xf32, #tpu.memory_space<vmem>>, vector<1x8x1xf32>
    %33 = vector.shape_cast %32 : vector<1x8x1xf32> to vector<8x1xf32>
    %34 = arith.mulf %28, %33 : vector<8x1xf32>
    %cst_22 = arith.constant dense<0.000000e+00> : vector<8xf32>
    %35 = vector.multi_reduction <add>, %31, %cst_22 [1] : vector<8x8xf32> to vector<8xf32>
    %36 = vector.shape_cast %35 : vector<8xf32> to vector<8x1xf32>
    %37 = arith.addf %34, %36 : vector<8x1xf32>
    %c0_23 = arith.constant 0 : index
    %c0_24 = arith.constant 0 : index
    %c0_25 = arith.constant 0 : index
    %38 = vector.load %arg10[%c0_23, %c0_24, %c0_25] : memref<4x8x1xf32, #tpu.memory_space<vmem>>, vector<1x8x1xf32>
    %39 = vector.shape_cast %38 : vector<1x8x1xf32> to vector<8x1xf32>
    %40 = vector.shape_cast %37 : vector<8x1xf32> to vector<1x8x1xf32>
    tpu.vector_store %arg10[%c0_23, %c0_24, %c0_25], %40 {strides = array<i32>} : memref<4x8x1xf32, #tpu.memory_space<vmem>>, vector<1x8x1xf32>,
    %c0_26 = arith.constant 0 : index
    %c0_27 = arith.constant 0 : index
    %c0_28 = arith.constant 0 : index
    %41 = vector.load %arg11[%c0_26, %c0_27, %c0_28] : memref<4x8x8xf32, #tpu.memory_space<vmem>>, vector<1x8x8xf32>
    %42 = vector.shape_cast %41 : vector<1x8x8xf32> to vector<8x8xf32>
    %43 = vector.broadcast %28 : vector<8x1xf32> to vector<8x8xf32>
    %44 = arith.mulf %43, %42 : vector<8x8xf32>
    %45 = arith.truncf %31 : vector<8x8xf32> to vector<8x8xbf16>
    %cst_29 = arith.constant dense<0.000000e+00> : vector<8x8xf32>
    %46 = tpu.matmul %45, %14, %cst_29 {dimension_numbers = #tpu.dot_dimension_numbers<[1], [0], [0], [1], [0, 0, 1, 1], [], []>} : vector<8x8xbf16>, vector<8x8xbf16>, vector<8x8xf32> -> vector<8x8xf32>
    %47 = arith.addf %44, %46 : vector<8x8xf32>
    %c0_30 = arith.constant 0 : index
    %c0_31 = arith.constant 0 : index
    %c0_32 = arith.constant 0 : index
    %48 = vector.load %arg11[%c0_30, %c0_31, %c0_32] : memref<4x8x8xf32, #tpu.memory_space<vmem>>, vector<1x8x8xf32>
    %49 = vector.shape_cast %48 : vector<1x8x8xf32> to vector<8x8xf32>
    %50 = vector.shape_cast %47 : vector<8x8xf32> to vector<1x8x8xf32>
    tpu.vector_store %arg11[%c0_30, %c0_31, %c0_32], %50 {strides = array<i32>} : memref<4x8x8xf32, #tpu.memory_space<vmem>>, vector<1x8x8xf32>,
    %c0_33 = arith.constant 0 : index
    %c0_34 = arith.constant 0 : index
    %c0_35 = arith.constant 0 : index
    %51 = vector.load %arg9[%c0_33, %c0_34, %c0_35] : memref<4x8x1xf32, #tpu.memory_space<vmem>>, vector<1x8x1xf32>
    %52 = vector.shape_cast %51 : vector<1x8x1xf32> to vector<8x1xf32>
    %53 = vector.shape_cast %26 : vector<8x1xf32> to vector<1x8x1xf32>
    tpu.vector_store %arg9[%c0_33, %c0_34, %c0_35], %53 {strides = array<i32>} : memref<4x8x1xf32, #tpu.memory_space<vmem>>, vector<1x8x1xf32>,
    %54 = vector.extract_strided_slice %4 {offsets = [0, 8], sizes = [8, 8], strides = [1, 1]} : vector<8x32xbf16> to vector<8x8xbf16>
    %55 = vector.extract_strided_slice %6 {offsets = [0, 8], sizes = [8, 8], strides = [1, 1]} : vector<8x32xbf16> to vector<8x8xbf16>
    %56 = vector.extract_strided_slice %8 {offsets = [0, 8], sizes = [8, 8], strides = [1, 1]} : vector<8x32xbf16> to vector<8x8xbf16>
    %c1 = arith.constant 1 : index
    %c0_36 = arith.constant 0 : index
    %c0_37 = arith.constant 0 : index
    %57 = vector.load %arg6[%c1, %c0_36, %c0_37] : memref<4x8x8xbf16, #tpu.memory_space<vmem>>, vector<1x8x8xbf16>
    %58 = vector.shape_cast %57 : vector<1x8x8xbf16> to vector<8x8xbf16>
    %59 = arith.extf %58 : vector<8x8xbf16> to vector<8x8xf32>
    %cst_38 = arith.constant dense<0.000000e+00> : vector<8x8xf32>
    %60 = tpu.matmul %54, %55, %cst_38 {dimension_numbers = #tpu.dot_dimension_numbers<[1], [1], [0], [0], [0, 0, 1, 0], [], []>} : vector<8x8xbf16>, vector<8x8xbf16>, vector<8x8xf32> -> vector<8x8xf32>
    %61 = arith.addf %60, %59 : vector<8x8xf32>
    %62 = vector.broadcast %11 : vector<1x8xf32> to vector<8x8xf32>
    %63 = arith.addf %61, %62 : vector<8x8xf32>
    %c1_39 = arith.constant 1 : index
    %c0_40 = arith.constant 0 : index
    %c0_41 = arith.constant 0 : index
    %64 = vector.load %arg9[%c1_39, %c0_40, %c0_41] : memref<4x8x1xf32, #tpu.memory_space<vmem>>, vector<1x8x1xf32>
    %65 = vector.shape_cast %64 : vector<1x8x1xf32> to vector<8x1xf32>
    %cst_42 = arith.constant dense<0xFF800000> : vector<8xf32>
    %66 = vector.multi_reduction <maximumf>, %63, %cst_42 [1] : vector<8x8xf32> to vector<8xf32>
    %67 = vector.shape_cast %66 : vector<8xf32> to vector<8x1xf32>
    %68 = arith.maximumf %65, %67 : vector<8x1xf32>
    %69 = arith.subf %65, %68 : vector<8x1xf32>
    %70 = math.exp %69 : vector<8x1xf32>
    %71 = vector.broadcast %68 : vector<8x1xf32> to vector<8x8xf32>
    %72 = arith.subf %63, %71 : vector<8x8xf32>
    %73 = math.exp %72 : vector<8x8xf32>
    %c1_43 = arith.constant 1 : index
    %c0_44 = arith.constant 0 : index
    %c0_45 = arith.constant 0 : index
    %74 = vector.load %arg10[%c1_43, %c0_44, %c0_45] : memref<4x8x1xf32, #tpu.memory_space<vmem>>, vector<1x8x1xf32>
    %75 = vector.shape_cast %74 : vector<1x8x1xf32> to vector<8x1xf32>
    %76 = arith.mulf %70, %75 : vector<8x1xf32>
    %cst_46 = arith.constant dense<0.000000e+00> : vector<8xf32>
    %77 = vector.multi_reduction <add>, %73, %cst_46 [1] : vector<8x8xf32> to vector<8xf32>
    %78 = vector.shape_cast %77 : vector<8xf32> to vector<8x1xf32>
    %79 = arith.addf %76, %78 : vector<8x1xf32>
    %c1_47 = arith.constant 1 : index
    %c0_48 = arith.constant 0 : index
    %c0_49 = arith.constant 0 : index
    %80 = vector.load %arg10[%c1_47, %c0_48, %c0_49] : memref<4x8x1xf32, #tpu.memory_space<vmem>>, vector<1x8x1xf32>
    %81 = vector.shape_cast %80 : vector<1x8x1xf32> to vector<8x1xf32>
    %82 = vector.shape_cast %79 : vector<8x1xf32> to vector<1x8x1xf32>
    tpu.vector_store %arg10[%c1_47, %c0_48, %c0_49], %82 {strides = array<i32>} : memref<4x8x1xf32, #tpu.memory_space<vmem>>, vector<1x8x1xf32>,
    %c1_50 = arith.constant 1 : index
    %c0_51 = arith.constant 0 : index
    %c0_52 = arith.constant 0 : index
    %83 = vector.load %arg11[%c1_50, %c0_51, %c0_52] : memref<4x8x8xf32, #tpu.memory_space<vmem>>, vector<1x8x8xf32>
    %84 = vector.shape_cast %83 : vector<1x8x8xf32> to vector<8x8xf32>
    %85 = vector.broadcast %70 : vector<8x1xf32> to vector<8x8xf32>
    %86 = arith.mulf %85, %84 : vector<8x8xf32>
    %87 = arith.truncf %73 : vector<8x8xf32> to vector<8x8xbf16>
    %cst_53 = arith.constant dense<0.000000e+00> : vector<8x8xf32>
    %88 = tpu.matmul %87, %56, %cst_53 {dimension_numbers = #tpu.dot_dimension_numbers<[1], [0], [0], [1], [0, 0, 1, 1], [], []>} : vector<8x8xbf16>, vector<8x8xbf16>, vector<8x8xf32> -> vector<8x8xf32>
    %89 = arith.addf %86, %88 : vector<8x8xf32>
    %c1_54 = arith.constant 1 : index
    %c0_55 = arith.constant 0 : index
    %c0_56 = arith.constant 0 : index
    %90 = vector.load %arg11[%c1_54, %c0_55, %c0_56] : memref<4x8x8xf32, #tpu.memory_space<vmem>>, vector<1x8x8xf32>
    %91 = vector.shape_cast %90 : vector<1x8x8xf32> to vector<8x8xf32>
    %92 = vector.shape_cast %89 : vector<8x8xf32> to vector<1x8x8xf32>
    tpu.vector_store %arg11[%c1_54, %c0_55, %c0_56], %92 {strides = array<i32>} : memref<4x8x8xf32, #tpu.memory_space<vmem>>, vector<1x8x8xf32>,
    %c1_57 = arith.constant 1 : index
    %c0_58 = arith.constant 0 : index
    %c0_59 = arith.constant 0 : index
    %93 = vector.load %arg9[%c1_57, %c0_58, %c0_59] : memref<4x8x1xf32, #tpu.memory_space<vmem>>, vector<1x8x1xf32>
    %94 = vector.shape_cast %93 : vector<1x8x1xf32> to vector<8x1xf32>
    %95 = vector.shape_cast %68 : vector<8x1xf32> to vector<1x8x1xf32>
    tpu.vector_store %arg9[%c1_57, %c0_58, %c0_59], %95 {strides = array<i32>} : memref<4x8x1xf32, #tpu.memory_space<vmem>>, vector<1x8x1xf32>,
    %96 = vector.extract_strided_slice %4 {offsets = [0, 16], sizes = [8, 8], strides = [1, 1]} : vector<8x32xbf16> to vector<8x8xbf16>
    %97 = vector.extract_strided_slice %6 {offsets = [0, 16], sizes = [8, 8], strides = [1, 1]} : vector<8x32xbf16> to vector<8x8xbf16>
    %98 = vector.extract_strided_slice %8 {offsets = [0, 16], sizes = [8, 8], strides = [1, 1]} : vector<8x32xbf16> to vector<8x8xbf16>
    %c2 = arith.constant 2 : index
    %c0_60 = arith.constant 0 : index
    %c0_61 = arith.constant 0 : index
    %99 = vector.load %arg6[%c2, %c0_60, %c0_61] : memref<4x8x8xbf16, #tpu.memory_space<vmem>>, vector<1x8x8xbf16>
    %100 = vector.shape_cast %99 : vector<1x8x8xbf16> to vector<8x8xbf16>
    %101 = arith.extf %100 : vector<8x8xbf16> to vector<8x8xf32>
    %cst_62 = arith.constant dense<0.000000e+00> : vector<8x8xf32>
    %102 = tpu.matmul %96, %97, %cst_62 {dimension_numbers = #tpu.dot_dimension_numbers<[1], [1], [0], [0], [0, 0, 1, 0], [], []>} : vector<8x8xbf16>, vector<8x8xbf16>, vector<8x8xf32> -> vector<8x8xf32>
    %103 = arith.addf %102, %101 : vector<8x8xf32>
    %104 = vector.broadcast %11 : vector<1x8xf32> to vector<8x8xf32>
    %105 = arith.addf %103, %104 : vector<8x8xf32>
    %c2_63 = arith.constant 2 : index
    %c0_64 = arith.constant 0 : index
    %c0_65 = arith.constant 0 : index
    %106 = vector.load %arg9[%c2_63, %c0_64, %c0_65] : memref<4x8x1xf32, #tpu.memory_space<vmem>>, vector<1x8x1xf32>
    %107 = vector.shape_cast %106 : vector<1x8x1xf32> to vector<8x1xf32>
    %cst_66 = arith.constant dense<0xFF800000> : vector<8xf32>
    %108 = vector.multi_reduction <maximumf>, %105, %cst_66 [1] : vector<8x8xf32> to vector<8xf32>
    %109 = vector.shape_cast %108 : vector<8xf32> to vector<8x1xf32>
    %110 = arith.maximumf %107, %109 : vector<8x1xf32>
    %111 = arith.subf %107, %110 : vector<8x1xf32>
    %112 = math.exp %111 : vector<8x1xf32>
    %113 = vector.broadcast %110 : vector<8x1xf32> to vector<8x8xf32>
    %114 = arith.subf %105, %113 : vector<8x8xf32>
    %115 = math.exp %114 : vector<8x8xf32>
    %c2_67 = arith.constant 2 : index
    %c0_68 = arith.constant 0 : index
    %c0_69 = arith.constant 0 : index
    %116 = vector.load %arg10[%c2_67, %c0_68, %c0_69] : memref<4x8x1xf32, #tpu.memory_space<vmem>>, vector<1x8x1xf32>
    %117 = vector.shape_cast %116 : vector<1x8x1xf32> to vector<8x1xf32>
    %118 = arith.mulf %112, %117 : vector<8x1xf32>
    %cst_70 = arith.constant dense<0.000000e+00> : vector<8xf32>
    %119 = vector.multi_reduction <add>, %115, %cst_70 [1] : vector<8x8xf32> to vector<8xf32>
    %120 = vector.shape_cast %119 : vector<8xf32> to vector<8x1xf32>
    %121 = arith.addf %118, %120 : vector<8x1xf32>
    %c2_71 = arith.constant 2 : index
    %c0_72 = arith.constant 0 : index
    %c0_73 = arith.constant 0 : index
    %122 = vector.load %arg10[%c2_71, %c0_72, %c0_73] : memref<4x8x1xf32, #tpu.memory_space<vmem>>, vector<1x8x1xf32>
    %123 = vector.shape_cast %122 : vector<1x8x1xf32> to vector<8x1xf32>
    %124 = vector.shape_cast %121 : vector<8x1xf32> to vector<1x8x1xf32>
    tpu.vector_store %arg10[%c2_71, %c0_72, %c0_73], %124 {strides = array<i32>} : memref<4x8x1xf32, #tpu.memory_space<vmem>>, vector<1x8x1xf32>,
    %c2_74 = arith.constant 2 : index
    %c0_75 = arith.constant 0 : index
    %c0_76 = arith.constant 0 : index
    %125 = vector.load %arg11[%c2_74, %c0_75, %c0_76] : memref<4x8x8xf32, #tpu.memory_space<vmem>>, vector<1x8x8xf32>
    %126 = vector.shape_cast %125 : vector<1x8x8xf32> to vector<8x8xf32>
    %127 = vector.broadcast %112 : vector<8x1xf32> to vector<8x8xf32>
    %128 = arith.mulf %127, %126 : vector<8x8xf32>
    %129 = arith.truncf %115 : vector<8x8xf32> to vector<8x8xbf16>
    %cst_77 = arith.constant dense<0.000000e+00> : vector<8x8xf32>
    %130 = tpu.matmul %129, %98, %cst_77 {dimension_numbers = #tpu.dot_dimension_numbers<[1], [0], [0], [1], [0, 0, 1, 1], [], []>} : vector<8x8xbf16>, vector<8x8xbf16>, vector<8x8xf32> -> vector<8x8xf32>
    %131 = arith.addf %128, %130 : vector<8x8xf32>
    %c2_78 = arith.constant 2 : index
    %c0_79 = arith.constant 0 : index
    %c0_80 = arith.constant 0 : index
    %132 = vector.load %arg11[%c2_78, %c0_79, %c0_80] : memref<4x8x8xf32, #tpu.memory_space<vmem>>, vector<1x8x8xf32>
    %133 = vector.shape_cast %132 : vector<1x8x8xf32> to vector<8x8xf32>
    %134 = vector.shape_cast %131 : vector<8x8xf32> to vector<1x8x8xf32>
    tpu.vector_store %arg11[%c2_78, %c0_79, %c0_80], %134 {strides = array<i32>} : memref<4x8x8xf32, #tpu.memory_space<vmem>>, vector<1x8x8xf32>,
    %c2_81 = arith.constant 2 : index
    %c0_82 = arith.constant 0 : index
    %c0_83 = arith.constant 0 : index
    %135 = vector.load %arg9[%c2_81, %c0_82, %c0_83] : memref<4x8x1xf32, #tpu.memory_space<vmem>>, vector<1x8x1xf32>
    %136 = vector.shape_cast %135 : vector<1x8x1xf32> to vector<8x1xf32>
    %137 = vector.shape_cast %110 : vector<8x1xf32> to vector<1x8x1xf32>
    tpu.vector_store %arg9[%c2_81, %c0_82, %c0_83], %137 {strides = array<i32>} : memref<4x8x1xf32, #tpu.memory_space<vmem>>, vector<1x8x1xf32>,
    %138 = vector.extract_strided_slice %4 {offsets = [0, 24], sizes = [8, 8], strides = [1, 1]} : vector<8x32xbf16> to vector<8x8xbf16>
    %139 = vector.extract_strided_slice %6 {offsets = [0, 24], sizes = [8, 8], strides = [1, 1]} : vector<8x32xbf16> to vector<8x8xbf16>
    %140 = vector.extract_strided_slice %8 {offsets = [0, 24], sizes = [8, 8], strides = [1, 1]} : vector<8x32xbf16> to vector<8x8xbf16>
    %c3 = arith.constant 3 : index
    %c0_84 = arith.constant 0 : index
    %c0_85 = arith.constant 0 : index
    %141 = vector.load %arg6[%c3, %c0_84, %c0_85] : memref<4x8x8xbf16, #tpu.memory_space<vmem>>, vector<1x8x8xbf16>
    %142 = vector.shape_cast %141 : vector<1x8x8xbf16> to vector<8x8xbf16>
    %143 = arith.extf %142 : vector<8x8xbf16> to vector<8x8xf32>
    %cst_86 = arith.constant dense<0.000000e+00> : vector<8x8xf32>
    %144 = tpu.matmul %138, %139, %cst_86 {dimension_numbers = #tpu.dot_dimension_numbers<[1], [1], [0], [0], [0, 0, 1, 0], [], []>} : vector<8x8xbf16>, vector<8x8xbf16>, vector<8x8xf32> -> vector<8x8xf32>
    %145 = arith.addf %144, %143 : vector<8x8xf32>
    %146 = vector.broadcast %11 : vector<1x8xf32> to vector<8x8xf32>
    %147 = arith.addf %145, %146 : vector<8x8xf32>
    %c3_87 = arith.constant 3 : index
    %c0_88 = arith.constant 0 : index
    %c0_89 = arith.constant 0 : index
    %148 = vector.load %arg9[%c3_87, %c0_88, %c0_89] : memref<4x8x1xf32, #tpu.memory_space<vmem>>, vector<1x8x1xf32>
    %149 = vector.shape_cast %148 : vector<1x8x1xf32> to vector<8x1xf32>
    %cst_90 = arith.constant dense<0xFF800000> : vector<8xf32>
    %150 = vector.multi_reduction <maximumf>, %147, %cst_90 [1] : vector<8x8xf32> to vector<8xf32>
    %151 = vector.shape_cast %150 : vector<8xf32> to vector<8x1xf32>
    %152 = arith.maximumf %149, %151 : vector<8x1xf32>
    %153 = arith.subf %149, %152 : vector<8x1xf32>
    %154 = math.exp %153 : vector<8x1xf32>
    %155 = vector.broadcast %152 : vector<8x1xf32> to vector<8x8xf32>
    %156 = arith.subf %147, %155 : vector<8x8xf32>
    %157 = math.exp %156 : vector<8x8xf32>
    %c3_91 = arith.constant 3 : index
    %c0_92 = arith.constant 0 : index
    %c0_93 = arith.constant 0 : index
    %158 = vector.load %arg10[%c3_91, %c0_92, %c0_93] : memref<4x8x1xf32, #tpu.memory_space<vmem>>, vector<1x8x1xf32>
    %159 = vector.shape_cast %158 : vector<1x8x1xf32> to vector<8x1xf32>
    %160 = arith.mulf %154, %159 : vector<8x1xf32>
    %cst_94 = arith.constant dense<0.000000e+00> : vector<8xf32>
    %161 = vector.multi_reduction <add>, %157, %cst_94 [1] : vector<8x8xf32> to vector<8xf32>
    %162 = vector.shape_cast %161 : vector<8xf32> to vector<8x1xf32>
    %163 = arith.addf %160, %162 : vector<8x1xf32>
    %c3_95 = arith.constant 3 : index
    %c0_96 = arith.constant 0 : index
    %c0_97 = arith.constant 0 : index
    %164 = vector.load %arg10[%c3_95, %c0_96, %c0_97] : memref<4x8x1xf32, #tpu.memory_space<vmem>>, vector<1x8x1xf32>
    %165 = vector.shape_cast %164 : vector<1x8x1xf32> to vector<8x1xf32>
    %166 = vector.shape_cast %163 : vector<8x1xf32> to vector<1x8x1xf32>
    tpu.vector_store %arg10[%c3_95, %c0_96, %c0_97], %166 {strides = array<i32>} : memref<4x8x1xf32, #tpu.memory_space<vmem>>, vector<1x8x1xf32>,
    %c3_98 = arith.constant 3 : index
    %c0_99 = arith.constant 0 : index
    %c0_100 = arith.constant 0 : index
    %167 = vector.load %arg11[%c3_98, %c0_99, %c0_100] : memref<4x8x8xf32, #tpu.memory_space<vmem>>, vector<1x8x8xf32>
    %168 = vector.shape_cast %167 : vector<1x8x8xf32> to vector<8x8xf32>
    %169 = vector.broadcast %154 : vector<8x1xf32> to vector<8x8xf32>
    %170 = arith.mulf %169, %168 : vector<8x8xf32>
    %171 = arith.truncf %157 : vector<8x8xf32> to vector<8x8xbf16>
    %cst_101 = arith.constant dense<0.000000e+00> : vector<8x8xf32>
    %172 = tpu.matmul %171, %140, %cst_101 {dimension_numbers = #tpu.dot_dimension_numbers<[1], [0], [0], [1], [0, 0, 1, 1], [], []>} : vector<8x8xbf16>, vector<8x8xbf16>, vector<8x8xf32> -> vector<8x8xf32>
    %173 = arith.addf %170, %172 : vector<8x8xf32>
    %c3_102 = arith.constant 3 : index
    %c0_103 = arith.constant 0 : index
    %c0_104 = arith.constant 0 : index
    %174 = vector.load %arg11[%c3_102, %c0_103, %c0_104] : memref<4x8x8xf32, #tpu.memory_space<vmem>>, vector<1x8x8xf32>
    %175 = vector.shape_cast %174 : vector<1x8x8xf32> to vector<8x8xf32>
    %176 = vector.shape_cast %173 : vector<8x8xf32> to vector<1x8x8xf32>
    tpu.vector_store %arg11[%c3_102, %c0_103, %c0_104], %176 {strides = array<i32>} : memref<4x8x8xf32, #tpu.memory_space<vmem>>, vector<1x8x8xf32>,
    %c3_105 = arith.constant 3 : index
    %c0_106 = arith.constant 0 : index
    %c0_107 = arith.constant 0 : index
    %177 = vector.load %arg9[%c3_105, %c0_106, %c0_107] : memref<4x8x1xf32, #tpu.memory_space<vmem>>, vector<1x8x1xf32>
    %178 = vector.shape_cast %177 : vector<1x8x1xf32> to vector<8x1xf32>
    %179 = vector.shape_cast %152 : vector<8x1xf32> to vector<1x8x1xf32>
    tpu.vector_store %arg9[%c3_105, %c0_106, %c0_107], %179 {strides = array<i32>} : memref<4x8x1xf32, #tpu.memory_space<vmem>>, vector<1x8x1xf32>,
    %c0_i32_108 = arith.constant 0 : i32
    %180 = arith.cmpi eq, %arg2, %c0_i32_108 : i32
    %181 = arith.extui %180 : i1 to i32
    %c0_i32_109 = arith.constant 0 : i32
    %182 = arith.cmpi ne, %181, %c0_i32_109 : i32
    scf.if %182 {
      %c0_110 = arith.constant 0 : index
      %c0_111 = arith.constant 0 : index
      %c0_112 = arith.constant 0 : index
      %183 = vector.load %arg10[%c0_110, %c0_111, %c0_112] : memref<4x8x1xf32, #tpu.memory_space<vmem>>, vector<1x8x1xf32>
      %184 = vector.shape_cast %183 : vector<1x8x1xf32> to vector<8x1xf32>
      %185 = tpu.reciprocal %184 : vector<8x1xf32> -> vector<8x1xf32>
      %c0_113 = arith.constant 0 : index
      %c0_114 = arith.constant 0 : index
      %c0_115 = arith.constant 0 : index
      %186 = vector.load %arg11[%c0_113, %c0_114, %c0_115] : memref<4x8x8xf32, #tpu.memory_space<vmem>>, vector<1x8x8xf32>
      %187 = vector.shape_cast %186 : vector<1x8x8xf32> to vector<8x8xf32>
      %188 = vector.broadcast %185 : vector<8x1xf32> to vector<8x8xf32>
      %189 = arith.mulf %187, %188 : vector<8x8xf32>
      %c1_116 = arith.constant 1 : index
      %c0_117 = arith.constant 0 : index
      %c0_118 = arith.constant 0 : index
      %190 = vector.load %arg10[%c1_116, %c0_117, %c0_118] : memref<4x8x1xf32, #tpu.memory_space<vmem>>, vector<1x8x1xf32>
      %191 = vector.shape_cast %190 : vector<1x8x1xf32> to vector<8x1xf32>
      %192 = tpu.reciprocal %191 : vector<8x1xf32> -> vector<8x1xf32>
      %c1_119 = arith.constant 1 : index
      %c0_120 = arith.constant 0 : index
      %c0_121 = arith.constant 0 : index
      %193 = vector.load %arg11[%c1_119, %c0_120, %c0_121] : memref<4x8x8xf32, #tpu.memory_space<vmem>>, vector<1x8x8xf32>
      %194 = vector.shape_cast %193 : vector<1x8x8xf32> to vector<8x8xf32>
      %195 = vector.broadcast %192 : vector<8x1xf32> to vector<8x8xf32>
      %196 = arith.mulf %194, %195 : vector<8x8xf32>
      %c2_122 = arith.constant 2 : index
      %c0_123 = arith.constant 0 : index
      %c0_124 = arith.constant 0 : index
      %197 = vector.load %arg10[%c2_122, %c0_123, %c0_124] : memref<4x8x1xf32, #tpu.memory_space<vmem>>, vector<1x8x1xf32>
      %198 = vector.shape_cast %197 : vector<1x8x1xf32> to vector<8x1xf32>
      %199 = tpu.reciprocal %198 : vector<8x1xf32> -> vector<8x1xf32>
      %c2_125 = arith.constant 2 : index
      %c0_126 = arith.constant 0 : index
      %c0_127 = arith.constant 0 : index
      %200 = vector.load %arg11[%c2_125, %c0_126, %c0_127] : memref<4x8x8xf32, #tpu.memory_space<vmem>>, vector<1x8x8xf32>
      %201 = vector.shape_cast %200 : vector<1x8x8xf32> to vector<8x8xf32>
      %202 = vector.broadcast %199 : vector<8x1xf32> to vector<8x8xf32>
      %203 = arith.mulf %201, %202 : vector<8x8xf32>
      %c3_128 = arith.constant 3 : index
      %c0_129 = arith.constant 0 : index
      %c0_130 = arith.constant 0 : index
      %204 = vector.load %arg10[%c3_128, %c0_129, %c0_130] : memref<4x8x1xf32, #tpu.memory_space<vmem>>, vector<1x8x1xf32>
      %205 = vector.shape_cast %204 : vector<1x8x1xf32> to vector<8x1xf32>
      %206 = tpu.reciprocal %205 : vector<8x1xf32> -> vector<8x1xf32>
      %c3_131 = arith.constant 3 : index
      %c0_132 = arith.constant 0 : index
      %c0_133 = arith.constant 0 : index
      %207 = vector.load %arg11[%c3_131, %c0_132, %c0_133] : memref<4x8x8xf32, #tpu.memory_space<vmem>>, vector<1x8x8xf32>
      %208 = vector.shape_cast %207 : vector<1x8x8xf32> to vector<8x8xf32>
      %209 = vector.broadcast %206 : vector<8x1xf32> to vector<8x8xf32>
      %210 = arith.mulf %208, %209 : vector<8x8xf32>
      %211 = tpu.concatenate %189, %196, %203, %210 in 1 : vector<8x8xf32>, vector<8x8xf32>, vector<8x8xf32>, vector<8x8xf32> -> vector<8x32xf32>
      %212 = arith.truncf %211 : vector<8x32xf32> to vector<8x32xbf16>
      %c0_134 = arith.constant 0 : index
      %c0_135 = arith.constant 0 : index
      %c0_136 = arith.constant 0 : index
      %213 = vector.load %arg8[%c0_134, %c0_135, %c0_136] : memref<1x8x32xbf16, #tpu.memory_space<vmem>>, vector<1x8x32xbf16>
      %214 = vector.shape_cast %213 : vector<1x8x32xbf16> to vector<8x32xbf16>
      %215 = vector.shape_cast %212 : vector<8x32xbf16> to vector<1x8x32xbf16>
      tpu.vector_store %arg8[%c0_134, %c0_135, %c0_136], %215 {strides = array<i32>} : memref<1x8x32xbf16, #tpu.memory_space<vmem>>, vector<1x8x32xbf16>,
    } else {
    }
    return
  }
  func.func @transform_0(%arg0: i32, %arg1: i32, %arg2: i32) -> (i32, i32, i32) {
    %c0_i32 = arith.constant 0 : i32
    %c0_i32_0 = arith.constant 0 : i32
    return %arg0, %arg1, %c0_i32 : i32, i32, i32
  }
  func.func @transform_1(%arg0: i32, %arg1: i32, %arg2: i32) -> (i32, i32, i32) {
    %c0_i32 = arith.constant 0 : i32
    %c0_i32_0 = arith.constant 0 : i32
    return %arg0, %arg2, %c0_i32 : i32, i32, i32
  }
  func.func @transform_2(%arg0: i32, %arg1: i32, %arg2: i32) -> (i32, i32, i32) {
    %c0_i32 = arith.constant 0 : i32
    %c0_i32_0 = arith.constant 0 : i32
    return %arg0, %arg2, %c0_i32 : i32, i32, i32
  }
  func.func @transform_3(%arg0: i32, %arg1: i32, %arg2: i32) -> (i32, i32, i32) {
    %c0_i32 = arith.constant 0 : i32
    %c0_i32_0 = arith.constant 0 : i32
    return %c0_i32, %arg1, %arg2 : i32, i32, i32
  }
  func.func @transform_4(%arg0: i32, %arg1: i32, %arg2: i32) -> (i32, i32, i32) {
    %c0_i32 = arith.constant 0 : i32
    %c0_i32_0 = arith.constant 0 : i32
    return %arg0, %c0_i32, %arg2 : i32, i32, i32
  }
  func.func @transform_5(%arg0: i32, %arg1: i32, %arg2: i32) -> (i32, i32, i32) {
    %c0_i32 = arith.constant 0 : i32
    %c0_i32_0 = arith.constant 0 : i32
    return %arg0, %arg1, %c0_i32 : i32, i32, i32
  }
}

module attributes {stable_mosaic.version = 11 : i64} {
  func.func @_ffn_kernel(%arg0: i32, %arg1: i32, %arg2: memref<16x32xf32, #tpu.memory_space<vmem>>, %arg3: memref<1x32xf32, #tpu.memory_space<vmem>>, %arg4: memref<32x64xbf16, #tpu.memory_space<vmem>>, %arg5: memref<64x32xbf16, #tpu.memory_space<vmem>>, %arg6: memref<16x32xf32, #tpu.memory_space<vmem>>, %arg7: memref<16x32xf32, #tpu.memory_space<vmem>>) attributes {dimension_semantics = [#tpu.dimension_semantics<parallel>, #tpu.dimension_semantics<arbitrary>], iteration_bounds = array<i64: 1, 1>, scalar_prefetch = 0 : i64, scratch_operands = 1 : i64, tpu.core_type = #tpu.core_type<tc>, window_params = [{transform_indices = @transform_0, window_bounds = array<i64: 16, 32>}, {pipeline_mode = #tpu.pipeline_mode<synchronous>, transform_indices = @transform_1, window_bounds = array<i64: 1, 32>}, {transform_indices = @transform_2, window_bounds = array<i64: 32, 64>}, {transform_indices = @transform_3, window_bounds = array<i64: 64, 32>}, {transform_indices = @transform_4, window_bounds = array<i64: 16, 32>}]} {
    %c0_i32 = arith.constant 0 : i32
    %0 = arith.cmpi eq, %arg1, %c0_i32 : i32
    %1 = arith.extui %0 : i1 to i32
    %c0_i32_0 = arith.constant 0 : i32
    %2 = arith.cmpi ne, %1, %c0_i32_0 : i32
    scf.if %2 {
      %cst_19 = arith.constant 0.000000e+00 : f32
      %31 = vector.broadcast %cst_19 : f32 to vector<16x32xf32>
      %c0_20 = arith.constant 0 : index
      %c0_21 = arith.constant 0 : index
      %32 = vector.load %arg7[%c0_20, %c0_21] : memref<16x32xf32, #tpu.memory_space<vmem>>, vector<16x32xf32>
      tpu.vector_store %arg7[%c0_20, %c0_21], %31 {strides = array<i32>} : memref<16x32xf32, #tpu.memory_space<vmem>>, vector<16x32xf32>,
    } else {
    }
    %c0 = arith.constant 0 : index
    %c0_1 = arith.constant 0 : index
    %3 = vector.load %arg2[%c0, %c0_1] : memref<16x32xf32, #tpu.memory_space<vmem>>, vector<16x32xf32>
    %4 = arith.mulf %3, %3 : vector<16x32xf32>
    %cst = arith.constant dense<0.000000e+00> : vector<16xf32>
    %5 = vector.multi_reduction <add>, %4, %cst [1] : vector<16x32xf32> to vector<16xf32>
    %6 = vector.shape_cast %5 : vector<16xf32> to vector<16x1xf32>
    %cst_2 = arith.constant 3.200000e+01 : f32
    %7 = vector.broadcast %cst_2 : f32 to vector<16x1xf32>
    %8 = arith.divf %6, %7 : vector<16x1xf32>
    %cst_3 = arith.constant 9.99999997E-7 : f32
    %9 = vector.broadcast %cst_3 : f32 to vector<16x1xf32>
    %10 = arith.addf %8, %9 : vector<16x1xf32>
    %11 = math.rsqrt %10 : vector<16x1xf32>
    %12 = vector.broadcast %11 : vector<16x1xf32> to vector<16x32xf32>
    %13 = arith.mulf %3, %12 : vector<16x32xf32>
    %c0_4 = arith.constant 0 : index
    %c0_5 = arith.constant 0 : index
    %14 = vector.load %arg3[%c0_4, %c0_5] : memref<1x32xf32, #tpu.memory_space<vmem>>, vector<1x32xf32>
    %15 = vector.broadcast %14 : vector<1x32xf32> to vector<16x32xf32>
    %16 = arith.mulf %13, %15 : vector<16x32xf32>
    %17 = arith.truncf %16 : vector<16x32xf32> to vector<16x32xbf16>
    %c0_6 = arith.constant 0 : index
    %c0_7 = arith.constant 0 : index
    %18 = vector.load %arg4[%c0_6, %c0_7] : memref<32x64xbf16, #tpu.memory_space<vmem>>, vector<32x64xbf16>
    %cst_8 = arith.constant dense<0.000000e+00> : vector<16x64xf32>
    %19 = tpu.matmul %17, %18, %cst_8 {dimension_numbers = #tpu.dot_dimension_numbers<[1], [0], [0], [1], [0, 0, 1, 1], [], []>} : vector<16x32xbf16>, vector<32x64xbf16>, vector<16x64xf32> -> vector<16x64xf32>
    %cst_9 = arith.constant 0.000000e+00 : f32
    %20 = vector.broadcast %cst_9 : f32 to vector<16x64xf32>
    %21 = arith.maximumf %19, %20 : vector<16x64xf32>
    %c0_10 = arith.constant 0 : index
    %c0_11 = arith.constant 0 : index
    %22 = vector.load %arg7[%c0_10, %c0_11] : memref<16x32xf32, #tpu.memory_space<vmem>>, vector<16x32xf32>
    %23 = arith.truncf %21 : vector<16x64xf32> to vector<16x64xbf16>
    %c0_12 = arith.constant 0 : index
    %c0_13 = arith.constant 0 : index
    %24 = vector.load %arg5[%c0_12, %c0_13] : memref<64x32xbf16, #tpu.memory_space<vmem>>, vector<64x32xbf16>
    %cst_14 = arith.constant dense<0.000000e+00> : vector<16x32xf32>
    %25 = tpu.matmul %23, %24, %cst_14 {dimension_numbers = #tpu.dot_dimension_numbers<[1], [0], [0], [1], [0, 0, 1, 1], [], []>} : vector<16x64xbf16>, vector<64x32xbf16>, vector<16x32xf32> -> vector<16x32xf32>
    %26 = arith.addf %22, %25 : vector<16x32xf32>
    %c0_15 = arith.constant 0 : index
    %c0_16 = arith.constant 0 : index
    %27 = vector.load %arg7[%c0_15, %c0_16] : memref<16x32xf32, #tpu.memory_space<vmem>>, vector<16x32xf32>
    tpu.vector_store %arg7[%c0_15, %c0_16], %26 {strides = array<i32>} : memref<16x32xf32, #tpu.memory_space<vmem>>, vector<16x32xf32>,
    %c0_i32_17 = arith.constant 0 : i32
    %28 = arith.cmpi eq, %arg1, %c0_i32_17 : i32
    %29 = arith.extui %28 : i1 to i32
    %c0_i32_18 = arith.constant 0 : i32
    %30 = arith.cmpi ne, %29, %c0_i32_18 : i32
    scf.if %30 {
      %c0_19 = arith.constant 0 : index
      %c0_20 = arith.constant 0 : index
      %31 = vector.load %arg7[%c0_19, %c0_20] : memref<16x32xf32, #tpu.memory_space<vmem>>, vector<16x32xf32>
      %32 = arith.addf %31, %3 : vector<16x32xf32>
      %c0_21 = arith.constant 0 : index
      %c0_22 = arith.constant 0 : index
      %33 = vector.load %arg6[%c0_21, %c0_22] : memref<16x32xf32, #tpu.memory_space<vmem>>, vector<16x32xf32>
      tpu.vector_store %arg6[%c0_21, %c0_22], %32 {strides = array<i32>} : memref<16x32xf32, #tpu.memory_space<vmem>>, vector<16x32xf32>,
    } else {
    }
    return
  }
  func.func @transform_0(%arg0: i32, %arg1: i32) -> (i32, i32) {
    %c0_i32 = arith.constant 0 : i32
    %c0_i32_0 = arith.constant 0 : i32
    return %arg0, %c0_i32 : i32, i32
  }
  func.func @transform_1(%arg0: i32, %arg1: i32) -> (i32, i32) {
    %c0_i32 = arith.constant 0 : i32
    %c0_i32_0 = arith.constant 0 : i32
    %c0_i32_1 = arith.constant 0 : i32
    return %c0_i32, %c0_i32_0 : i32, i32
  }
  func.func @transform_2(%arg0: i32, %arg1: i32) -> (i32, i32) {
    %c0_i32 = arith.constant 0 : i32
    %c0_i32_0 = arith.constant 0 : i32
    return %c0_i32, %arg1 : i32, i32
  }
  func.func @transform_3(%arg0: i32, %arg1: i32) -> (i32, i32) {
    %c0_i32 = arith.constant 0 : i32
    %c0_i32_0 = arith.constant 0 : i32
    return %arg1, %c0_i32 : i32, i32
  }
  func.func @transform_4(%arg0: i32, %arg1: i32) -> (i32, i32) {
    %c0_i32 = arith.constant 0 : i32
    %c0_i32_0 = arith.constant 0 : i32
    return %arg0, %c0_i32 : i32, i32
  }
}

module attributes {stable_mosaic.version = 11 : i64} {
  func.func @_rmsnorm_kernel(%arg0: i32, %arg1: memref<16x32xf32, #tpu.memory_space<vmem>>, %arg2: memref<1x32xf32, #tpu.memory_space<vmem>>, %arg3: memref<16x32xf32, #tpu.memory_space<vmem>>) attributes {dimension_semantics = [#tpu.dimension_semantics<parallel>], iteration_bounds = array<i64: 1>, scalar_prefetch = 0 : i64, scratch_operands = 0 : i64, tpu.core_type = #tpu.core_type<tc>, window_params = [{transform_indices = @transform_0, window_bounds = array<i64: 16, 32>}, {pipeline_mode = #tpu.pipeline_mode<synchronous>, transform_indices = @transform_1, window_bounds = array<i64: 1, 32>}, {transform_indices = @transform_2, window_bounds = array<i64: 16, 32>}]} {
    %c0 = arith.constant 0 : index
    %c0_0 = arith.constant 0 : index
    %0 = vector.load %arg1[%c0, %c0_0] : memref<16x32xf32, #tpu.memory_space<vmem>>, vector<16x32xf32>
    %1 = arith.mulf %0, %0 : vector<16x32xf32>
    %cst = arith.constant dense<0.000000e+00> : vector<16xf32>
    %2 = vector.multi_reduction <add>, %1, %cst [1] : vector<16x32xf32> to vector<16xf32>
    %3 = vector.shape_cast %2 : vector<16xf32> to vector<16x1xf32>
    %cst_1 = arith.constant 3.200000e+01 : f32
    %4 = vector.broadcast %cst_1 : f32 to vector<16x1xf32>
    %5 = arith.divf %3, %4 : vector<16x1xf32>
    %cst_2 = arith.constant 9.99999997E-7 : f32
    %6 = vector.broadcast %cst_2 : f32 to vector<16x1xf32>
    %7 = arith.addf %5, %6 : vector<16x1xf32>
    %8 = math.rsqrt %7 : vector<16x1xf32>
    %9 = vector.broadcast %8 : vector<16x1xf32> to vector<16x32xf32>
    %10 = arith.mulf %0, %9 : vector<16x32xf32>
    %c0_3 = arith.constant 0 : index
    %c0_4 = arith.constant 0 : index
    %11 = vector.load %arg2[%c0_3, %c0_4] : memref<1x32xf32, #tpu.memory_space<vmem>>, vector<1x32xf32>
    %12 = vector.broadcast %11 : vector<1x32xf32> to vector<16x32xf32>
    %13 = arith.mulf %10, %12 : vector<16x32xf32>
    %c0_5 = arith.constant 0 : index
    %c0_6 = arith.constant 0 : index
    %14 = vector.load %arg3[%c0_5, %c0_6] : memref<16x32xf32, #tpu.memory_space<vmem>>, vector<16x32xf32>
    tpu.vector_store %arg3[%c0_5, %c0_6], %13 {strides = array<i32>} : memref<16x32xf32, #tpu.memory_space<vmem>>, vector<16x32xf32>,
    return
  }
  func.func @transform_0(%arg0: i32) -> (i32, i32) {
    %c0_i32 = arith.constant 0 : i32
    %c0_i32_0 = arith.constant 0 : i32
    return %arg0, %c0_i32 : i32, i32
  }
  func.func @transform_1(%arg0: i32) -> (i32, i32) {
    %c0_i32 = arith.constant 0 : i32
    %c0_i32_0 = arith.constant 0 : i32
    %c0_i32_1 = arith.constant 0 : i32
    return %c0_i32, %c0_i32_0 : i32, i32
  }
  func.func @transform_2(%arg0: i32) -> (i32, i32) {
    %c0_i32 = arith.constant 0 : i32
    %c0_i32_0 = arith.constant 0 : i32
    return %arg0, %c0_i32 : i32, i32
  }
}

</mosaic_0001>

<llo_original>
// kernel: t5_encoder_forward.11
$region0: #{t5_encoder_forward.11}
  #allocation0 [shape = 'u32[]', space=smem, size = 0x4, offset = 0x4, fixed_abs, tag = 'smem constant byte address 0x4 - core index']
  #allocation1 [shape = 'u32[144,128]{1,0:T(1,128)}', space=vmem, size = 0x12000, scoped, tag = 'internal scratch']
  #allocation2 [shape = 'f32[16,32]{1,0:T(8,128)}', space=vmem, size = 0x2000, scoped, tag = 'scratch operand']
  %s0 = inlined_call_operand.vmem [shape: bf16[16,32], index: 0, kind: input, shape index: {}]
  %s1 = inlined_call_operand.vmem [shape: bf16[32,32], index: 1, kind: input, shape index: {}]
  %s2 = inlined_call_operand.vmem [shape: f32[16,32], index: 2, kind: input, shape index: {}, may-alias: {2,3}]
  %s3 = inlined_call_operand.vmem [shape: f32[16,32], index: 3, kind: output, shape index: {}, may-alias: {2,3}]
  %s4 = sld [smem:[#allocation0]]
  $region30: #{t5_encoder_forward.11} parent=0
    _
  %s6 = ssub.s32 1, %s4
  %s7 = scalar_select 0, %s6, %s4
  // Predicated region
  $region2: #{t5_encoder_forward.11} parent=0 // pred_check
    _
  $region3: #{t5_encoder_forward.11} parent=0 // pred_check_branch
    %9 = sbr.rel (0) target = $region5
  $region4: #{t5_encoder_forward.11} parent=0 // pred_region
    _
  $region5: #{t5_encoder_forward.11} parent=0 // pred_fallthru
    _
  // Predicated region
  $region6: #{t5_encoder_forward.11} parent=0 // pred_check
    _
  $region7: #{t5_encoder_forward.11} parent=0 // pred_check_branch
    %11 = sbr.rel (0) target = $region9
  $region8: #{t5_encoder_forward.11} parent=0 // pred_region
    _
  $region9: #{t5_encoder_forward.11} parent=0 // pred_fallthru
    _
  // Predicated region
  $region10: #{t5_encoder_forward.11} parent=0 // pred_check
    _
  $region11: #{t5_encoder_forward.11} parent=0 // pred_check_branch
    %13 = sbr.rel (0) target = $region13
  $region12: #{t5_encoder_forward.11} parent=0 // pred_region
    _
  $region13: #{t5_encoder_forward.11} parent=0 // pred_fallthru
    _
  %p15 = scmp.eq.s32.totalorder 0, 0
  // Predicated region
  $region14: #{t5_encoder_forward.11} parent=0 // pred_check
    %p16 = pneg %p15
  $region15: #{t5_encoder_forward.11} parent=0 // pred_check_branch
    %18 = sbr.rel (%p16) target = $region17
  $region16: #{t5_encoder_forward.11} parent=0 // pred_region
    %vm19 = vcmask 261120
    %20 = vst.msk [vmem:[#allocation2] sm:$0xff] %vm19, 0.0
    %21 = vst.msk [vmem:[#allocation2 + $0x8] sm:$0xff] %vm19, 0.0
  $region17: #{t5_encoder_forward.11} parent=0 // pred_fallthru
    _
  %v22 = vld [vmem:[#allocation2] sm:$0xff]
  %v23 = vld [vmem:[#allocation2 + $0x8] sm:$0xff]
  %v24 = vld [vmem:[%s0] sm:$0xf]
  %v25 = vld [vmem:[%s0 + $0x4] sm:$0xf]
  %v26 = vld [vmem:[%s1] sm:$0xf]
  %v27 = vld [vmem:[%s1 + $0x4] sm:$0xf]
  %v28 = vld [vmem:[%s1 + $0x8] sm:$0xf]
  %v29 = vld [vmem:[%s1 + $0xc] sm:$0xf]
  %v32 = vunpack.c.l.b16 %v24
  %v33 = vunpack.c.l.b16 %v25
  %v34 = vpack.c.b16 %v33, %v32
  %v39 = vunpack.c.l.b16 %v26
  %v40 = vunpack.c.l.b16 %v27
  %v41 = vunpack.c.l.b16 %v28
  %v42 = vunpack.c.l.b16 %v29
  %v43 = vpack.c.b16 %v40, %v39
  %v44 = vpack.c.b16 %v42, %v41
  %vm47 = vcmask 261120
  %v49 = vsel %vm47, %v34, 0
  %51 = vmatprep.subr.bf16.mxu0 0
  %52 = vmatpush1.bf16.msra.mxu0 %v43
  %53 = vmatprep.subr.bf16.mxu0 0
  %54 = vmatpush1.bf16.msra.mxu0 %v44
  %55 = vmatprep.subr.bf16.mxu0 0
  %56 = vmatpush1.bf16.msra.mxu0 0
  %57 = vmatprep.subr.bf16.mxu0 0
  %58 = vmatpush1.bf16.msra.mxu0 0
  %59 = vmatprep.subr.bf16.mxu0 0
  %60 = vmatpush1.bf16.msra.mxu0 0
  %61 = vmatprep.subr.bf16.mxu0 0
  %62 = vmatpush1.bf16.msra.mxu0 0
  %63 = vmatprep.subr.bf16.mxu0 0
  %64 = vmatpush1.bf16.msra.mxu0 0
  %65 = vmatprep.subr.bf16.mxu0 0
  %66 = vmatpush1.bf16.msra.mxu0 0
  %67 = vmatprep.subr.bf16.mxu0 0
  %68 = vmatpush1.bf16.msra.mxu0 0
  %69 = vmatprep.subr.bf16.mxu0 0
  %70 = vmatpush1.bf16.msra.mxu0 0
  %71 = vmatprep.subr.bf16.mxu0 0
  %72 = vmatpush1.bf16.msra.mxu0 0
  %73 = vmatprep.subr.bf16.mxu0 0
  %74 = vmatpush1.bf16.msra.mxu0 0
  %75 = vmatprep.subr.bf16.mxu0 0
  %76 = vmatpush1.bf16.msra.mxu0 0
  %77 = vmatprep.subr.bf16.mxu0 0
  %78 = vmatpush1.bf16.msra.mxu0 0
  %79 = vmatprep.subr.bf16.mxu0 0
  %80 = vmatpush1.bf16.msra.mxu0 0
  %81 = vmatprep.subr.bf16.mxu0 0
  %82 = vmatpush1.bf16.msra.mxu0 0
  %83 = vmatprep.mubr.bf16.mxu0 0
  %84 = vmatmul.mubr.bf16.gmra.mrb[0].mxu0 %v49
  %v85 = vpop.f32.mrb[0].mxu0
  %v86 = vadd.f32 0.0, %v85
  %v87 = vpop.f32.mrb[0].mxu0
  %v88 = vpop.f32.mrb[0].mxu0
  %v89 = vadd.f32 0.0, %v88
  %v90 = vpop.f32.mrb[0].mxu0
  %91 = vdwg.mxu0
  %v92 = vadd.f32 %v22, %v86
  %v93 = vadd.f32 %v23, %v89
  %94 = vst.msk [vmem:[#allocation2] sm:$0xff] %vm47, %v92
  %95 = vst.msk [vmem:[#allocation2 + $0x8] sm:$0xff] %vm47, %v93
  // Predicated region
  $region18: #{t5_encoder_forward.11} parent=0 // pred_check
    %p96 = pneg %p15
  $region19: #{t5_encoder_forward.11} parent=0 // pred_check_branch
    %98 = sbr.rel (%p96) target = $region21
  $region20: #{t5_encoder_forward.11} parent=0 // pred_region
    %v99 = vld [vmem:[#allocation2] sm:$0xff]
    %v100 = vld [vmem:[#allocation2 + $0x8] sm:$0xff]
    %v101 = vld [vmem:[%s2] sm:$0xff]
    %v102 = vld [vmem:[%s2 + $0x8] sm:$0xff]
    %v103 = vadd.f32 %v99, %v101
    %v104 = vadd.f32 %v100, %v102
    %105 = vst.msk [vmem:[%s3] sm:$0xff] %vm47, %v103
    %106 = vst.msk [vmem:[%s3 + $0x8] sm:$0xff] %vm47, %v104
  $region21: #{t5_encoder_forward.11} parent=0 // pred_fallthru
    _
  // Predicated region
  $region22: #{t5_encoder_forward.11} parent=0 // pred_check
    _
  $region23: #{t5_encoder_forward.11} parent=0 // pred_check_branch
    %108 = sbr.rel (0) target = $region25
  $region24: #{t5_encoder_forward.11} parent=0 // pred_region
    _
  $region25: #{t5_encoder_forward.11} parent=0 // pred_fallthru
    _
  // Predicated region
  $region26: #{t5_encoder_forward.11} parent=0 // pred_check
    _
  $region27: #{t5_encoder_forward.11} parent=0 // pred_check_branch
    %110 = sbr.rel (0) target = $region29
  $region28: #{t5_encoder_forward.11} parent=0 // pred_region
    _
  $region29: #{t5_encoder_forward.11} parent=0 // pred_fallthru
    _

// kernel: t5_encoder_forward.9
$region0: #{t5_encoder_forward.9}
  #allocation0 [shape = 'u32[]', space=smem, size = 0x4, offset = 0x4, fixed_abs, tag = 'smem constant byte address 0x4 - core index']
  #allocation1 [shape = 'u32[144,128]{1,0:T(1,128)}', space=vmem, size = 0x12000, scoped, tag = 'internal scratch']
  %s0 = inlined_call_operand.vmem [shape: f32[16,32], index: 0, kind: input, shape index: {}]
  %s1 = inlined_call_operand.vmem [shape: f32[1,32], index: 1, kind: input, shape index: {}]
  %s2 = inlined_call_operand.vmem [shape: bf16[32,32], index: 2, kind: input, shape index: {}]
  %s3 = inlined_call_operand.vmem [shape: bf16[32,32], index: 3, kind: input, shape index: {}]
  %s4 = inlined_call_operand.vmem [shape: bf16[32,32], index: 4, kind: input, shape index: {}]
  %s5 = inlined_call_operand.vmem [shape: bf16[16,32], index: 5, kind: output, shape index: {0}]
  %s6 = inlined_call_operand.vmem [shape: bf16[16,32], index: 6, kind: output, shape index: {1}]
  %s7 = inlined_call_operand.vmem [shape: bf16[16,32], index: 7, kind: output, shape index: {2}]
  %8 = xla_tuple %s5, %s6, %s7
  %s9 = sld [smem:[#allocation0]]
  $region46: #{t5_encoder_forward.9} parent=0
    _
  %s11 = ssub.s32 1, %s9
  %s12 = scalar_select 0, %s11, %s9
  // Predicated region
  $region2: #{t5_encoder_forward.9} parent=0 // pred_check
    _
  $region3: #{t5_encoder_forward.9} parent=0 // pred_check_branch
    %14 = sbr.rel (0) target = $region5
  $region4: #{t5_encoder_forward.9} parent=0 // pred_region
    _
  $region5: #{t5_encoder_forward.9} parent=0 // pred_fallthru
    _
  // Predicated region
  $region6: #{t5_encoder_forward.9} parent=0 // pred_check
    _
  $region7: #{t5_encoder_forward.9} parent=0 // pred_check_branch
    %16 = sbr.rel (0) target = $region9
  $region8: #{t5_encoder_forward.9} parent=0 // pred_region
    _
  $region9: #{t5_encoder_forward.9} parent=0 // pred_fallthru
    _
  // Predicated region
  $region10: #{t5_encoder_forward.9} parent=0 // pred_check
    _
  $region11: #{t5_encoder_forward.9} parent=0 // pred_check_branch
    %18 = sbr.rel (0) target = $region13
  $region12: #{t5_encoder_forward.9} parent=0 // pred_region
    _
  $region13: #{t5_encoder_forward.9} parent=0 // pred_fallthru
    _
  // Predicated region
  $region14: #{t5_encoder_forward.9} parent=0 // pred_check
    _
  $region15: #{t5_encoder_forward.9} parent=0 // pred_check_branch
    %20 = sbr.rel (0) target = $region17
  $region16: #{t5_encoder_forward.9} parent=0 // pred_region
    _
  $region17: #{t5_encoder_forward.9} parent=0 // pred_fallthru
    _
  // Predicated region
  $region18: #{t5_encoder_forward.9} parent=0 // pred_check
    _
  $region19: #{t5_encoder_forward.9} parent=0 // pred_check_branch
    %22 = sbr.rel (0) target = $region21
  $region20: #{t5_encoder_forward.9} parent=0 // pred_region
    _
  $region21: #{t5_encoder_forward.9} parent=0 // pred_fallthru
    _
  %v24 = vld [vmem:[%s0] sm:$0xff]
  %v25 = vld [vmem:[%s0 + $0x8] sm:$0xff]
  %v26 = vmul.f32 %v24, %v24
  %v27 = vmul.f32 %v25, %v25
  %vm28 = vcmask 261120
  %v29 = vsel %vm28, %v26, 0.0
  %30 = vadd.xlane.f32.xlu0 %v29
  %v31 = vpop.xlane.xlu0 %30
  %v32 = vsel %vm28, %v27, 0.0
  %33 = vadd.xlane.f32.xlu0 %v32
  %v34 = vpop.xlane.xlu0 %33
  %v35 = vrcp.pop 32.0
  %v36 = vmul.f32 %v31, %v35
  %v37 = vmul.f32 %v34, %v35
  %v38 = vadd.f32 %v36, 1e-06
  %v39 = vadd.f32 %v37, 1e-06
  %v40 = vrsqrt.pop %v38
  %v41 = vrsqrt.pop %v39
  %v42 = vmul.f32 %v24, %v40
  %v43 = vmul.f32 %v25, %v41
  %v44 = vld [vmem:[%s1] sm:$0x1]
  %v46 = vlaneseq
  %v47 = vshrl.u32 %v46, 7
  %v48 = vsub.s32 0, %v47
  %v49 = vrot.slane %v44, %v48
  %v51 = vmul.f32 %v42, %v49
  %v52 = vmul.f32 %v43, %v49
  %v53 = vpack.c.bf16 %v52, %v51
  %v54 = vld [vmem:[%s2] sm:$0xf]
  %v55 = vld [vmem:[%s2 + $0x4] sm:$0xf]
  %v56 = vld [vmem:[%s2 + $0x8] sm:$0xf]
  %v57 = vld [vmem:[%s2 + $0xc] sm:$0xf]
  %v62 = vunpack.c.l.b16 %v54
  %v63 = vunpack.c.l.b16 %v55
  %v64 = vunpack.c.l.b16 %v56
  %v65 = vunpack.c.l.b16 %v57
  %v66 = vpack.c.b16 %v63, %v62
  %v67 = vpack.c.b16 %v65, %v64
  %v71 = vsel %vm28, %v53, 0
  %73 = vmatprep.subr.bf16.mxu0 0
  %74 = vmatpush1.bf16.msra.mxu0 %v66
  %75 = vmatprep.subr.bf16.mxu0 0
  %76 = vmatpush1.bf16.msra.mxu0 %v67
  %77 = vmatprep.subr.bf16.mxu0 0
  %78 = vmatpush1.bf16.msra.mxu0 0
  %79 = vmatprep.subr.bf16.mxu0 0
  %80 = vmatpush1.bf16.msra.mxu0 0
  %81 = vmatprep.subr.bf16.mxu0 0
  %82 = vmatpush1.bf16.msra.mxu0 0
  %83 = vmatprep.subr.bf16.mxu0 0
  %84 = vmatpush1.bf16.msra.mxu0 0
  %85 = vmatprep.subr.bf16.mxu0 0
  %86 = vmatpush1.bf16.msra.mxu0 0
  %87 = vmatprep.subr.bf16.mxu0 0
  %88 = vmatpush1.bf16.msra.mxu0 0
  %89 = vmatprep.subr.bf16.mxu0 0
  %90 = vmatpush1.bf16.msra.mxu0 0
  %91 = vmatprep.subr.bf16.mxu0 0
  %92 = vmatpush1.bf16.msra.mxu0 0
  %93 = vmatprep.subr.bf16.mxu0 0
  %94 = vmatpush1.bf16.msra.mxu0 0
  %95 = vmatprep.subr.bf16.mxu0 0
  %96 = vmatpush1.bf16.msra.mxu0 0
  %97 = vmatprep.subr.bf16.mxu0 0
  %98 = vmatpush1.bf16.msra.mxu0 0
  %99 = vmatprep.subr.bf16.mxu0 0
  %100 = vmatpush1.bf16.msra.mxu0 0
  %101 = vmatprep.subr.bf16.mxu0 0
  %102 = vmatpush1.bf16.msra.mxu0 0
  %103 = vmatprep.subr.bf16.mxu0 0
  %104 = vmatpush1.bf16.msra.mxu0 0
  %105 = vmatprep.mubr.bf16.mxu0 0
  %106 = vmatmul.mubr.bf16.gmra.mrb[0].mxu0 %v71
  %v107 = vpop.f32.mrb[0].mxu0
  %v108 = vadd.f32 0.0, %v107
  %v109 = vpop.f32.mrb[0].mxu0
  %v110 = vpop.f32.mrb[0].mxu0
  %v111 = vadd.f32 0.0, %v110
  %v112 = vpop.f32.mrb[0].mxu0
  %113 = vdwg.mxu0
  %v114 = vpack.c.bf16 %v111, %v108
  %v116 = vunpack.c.l.b16 %v114
  %v117 = vunpack.c.h.b16 %v114
  %v118 = vpack.c.b16 %v116, %v116
  %v119 = vpack.c.b16 %v117, %v117
  %vm122 = vcmask 257024
  %123 = vst.msk [vmem:[%s5] sm:$0xf] %vm122, %v118
  %124 = vst.msk [vmem:[%s5 + $0x4] sm:$0xf] %vm122, %v119
  %v125 = vld [vmem:[%s3] sm:$0xf]
  %v126 = vld [vmem:[%s3 + $0x4] sm:$0xf]
  %v127 = vld [vmem:[%s3 + $0x8] sm:$0xf]
  %v128 = vld [vmem:[%s3 + $0xc] sm:$0xf]
  %v133 = vunpack.c.l.b16 %v125
  %v134 = vunpack.c.l.b16 %v126
  %v135 = vunpack.c.l.b16 %v127
  %v136 = vunpack.c.l.b16 %v128
  %v137 = vpack.c.b16 %v134, %v133
  %v138 = vpack.c.b16 %v136, %v135
  %141 = vmatprep.subr.bf16.mxu0 0
  %142 = vmatpush1.bf16.msra.mxu0 %v137
  %143 = vmatprep.subr.bf16.mxu0 0
  %144 = vmatpush1.bf16.msra.mxu0 %v138
  %145 = vmatprep.subr.bf16.mxu0 0
  %146 = vmatpush1.bf16.msra.mxu0 0
  %147 = vmatprep.subr.bf16.mxu0 0
  %148 = vmatpush1.bf16.msra.mxu0 0
  %149 = vmatprep.subr.bf16.mxu0 0
  %150 = vmatpush1.bf16.msra.mxu0 0
  %151 = vmatprep.subr.bf16.mxu0 0
  %152 = vmatpush1.bf16.msra.mxu0 0
  %153 = vmatprep.subr.bf16.mxu0 0
  %154 = vmatpush1.bf16.msra.mxu0 0
  %155 = vmatprep.subr.bf16.mxu0 0
  %156 = vmatpush1.bf16.msra.mxu0 0
  %157 = vmatprep.subr.bf16.mxu0 0
  %158 = vmatpush1.bf16.msra.mxu0 0
  %159 = vmatprep.subr.bf16.mxu0 0
  %160 = vmatpush1.bf16.msra.mxu0 0
  %161 = vmatprep.subr.bf16.mxu0 0
  %162 = vmatpush1.bf16.msra.mxu0 0
  %163 = vmatprep.subr.bf16.mxu0 0
  %164 = vmatpush1.bf16.msra.mxu0 0
  %165 = vmatprep.subr.bf16.mxu0 0
  %166 = vmatpush1.bf16.msra.mxu0 0
  %167 = vmatprep.subr.bf16.mxu0 0
  %168 = vmatpush1.bf16.msra.mxu0 0
  %169 = vmatprep.subr.bf16.mxu0 0
  %170 = vmatpush1.bf16.msra.mxu0 0
  %171 = vmatprep.subr.bf16.mxu0 0
  %172 = vmatpush1.bf16.msra.mxu0 0
  %173 = vmatprep.mubr.bf16.mxu0 0
  %174 = vmatmul.mubr.bf16.gmra.mrb[0].mxu0 %v71
  %v175 = vpop.f32.mrb[0].mxu0
  %v176 = vadd.f32 0.0, %v175
  %v177 = vpop.f32.mrb[0].mxu0
  %v178 = vpop.f32.mrb[0].mxu0
  %v179 = vadd.f32 0.0, %v178
  %v180 = vpop.f32.mrb[0].mxu0
  %181 = vdwg.mxu0
  %v182 = vpack.c.bf16 %v179, %v176
  %v184 = vunpack.c.l.b16 %v182
  %v185 = vunpack.c.h.b16 %v182
  %v186 = vpack.c.b16 %v184, %v184
  %v187 = vpack.c.b16 %v185, %v185
  %190 = vst.msk [vmem:[%s6] sm:$0xf] %vm122, %v186
  %191 = vst.msk [vmem:[%s6 + $0x4] sm:$0xf] %vm122, %v187
  %v192 = vld [vmem:[%s4] sm:$0xf]
  %v193 = vld [vmem:[%s4 + $0x4] sm:$0xf]
  %v194 = vld [vmem:[%s4 + $0x8] sm:$0xf]
  %v195 = vld [vmem:[%s4 + $0xc] sm:$0xf]
  %v200 = vunpack.c.l.b16 %v192
  %v201 = vunpack.c.l.b16 %v193
  %v202 = vunpack.c.l.b16 %v194
  %v203 = vunpack.c.l.b16 %v195
  %v204 = vpack.c.b16 %v201, %v200
  %v205 = vpack.c.b16 %v203, %v202
  %208 = vmatprep.subr.bf16.mxu0 0
  %209 = vmatpush1.bf16.msra.mxu0 %v204
  %210 = vmatprep.subr.bf16.mxu0 0
  %211 = vmatpush1.bf16.msra.mxu0 %v205
  %212 = vmatprep.subr.bf16.mxu0 0
  %213 = vmatpush1.bf16.msra.mxu0 0
  %214 = vmatprep.subr.bf16.mxu0 0
  %215 = vmatpush1.bf16.msra.mxu0 0
  %216 = vmatprep.subr.bf16.mxu0 0
  %217 = vmatpush1.bf16.msra.mxu0 0
  %218 = vmatprep.subr.bf16.mxu0 0
  %219 = vmatpush1.bf16.msra.mxu0 0
  %220 = vmatprep.subr.bf16.mxu0 0
  %221 = vmatpush1.bf16.msra.mxu0 0
  %222 = vmatprep.subr.bf16.mxu0 0
  %223 = vmatpush1.bf16.msra.mxu0 0
  %224 = vmatprep.subr.bf16.mxu0 0
  %225 = vmatpush1.bf16.msra.mxu0 0
  %226 = vmatprep.subr.bf16.mxu0 0
  %227 = vmatpush1.bf16.msra.mxu0 0
  %228 = vmatprep.subr.bf16.mxu0 0
  %229 = vmatpush1.bf16.msra.mxu0 0
  %230 = vmatprep.subr.bf16.mxu0 0
  %231 = vmatpush1.bf16.msra.mxu0 0
  %232 = vmatprep.subr.bf16.mxu0 0
  %233 = vmatpush1.bf16.msra.mxu0 0
  %234 = vmatprep.subr.bf16.mxu0 0
  %235 = vmatpush1.bf16.msra.mxu0 0
  %236 = vmatprep.subr.bf16.mxu0 0
  %237 = vmatpush1.bf16.msra.mxu0 0
  %238 = vmatprep.subr.bf16.mxu0 0
  %239 = vmatpush1.bf16.msra.mxu0 0
  %240 = vmatprep.mubr.bf16.mxu0 0
  %241 = vmatmul.mubr.bf16.gmra.mrb[0].mxu0 %v71
  %v242 = vpop.f32.mrb[0].mxu0
  %v243 = vadd.f32 0.0, %v242
  %v244 = vpop.f32.mrb[0].mxu0
  %v245 = vpop.f32.mrb[0].mxu0
  %v246 = vadd.f32 0.0, %v245
  %v247 = vpop.f32.mrb[0].mxu0
  %248 = vdwg.mxu0
  %v249 = vpack.c.bf16 %v246, %v243
  %v251 = vunpack.c.l.b16 %v249
  %v252 = vunpack.c.h.b16 %v249
  %v253 = vpack.c.b16 %v251, %v251
  %v254 = vpack.c.b16 %v252, %v252
  %257 = vst.msk [vmem:[%s7] sm:$0xf] %vm122, %v253
  %258 = vst.msk [vmem:[%s7 + $0x4] sm:$0xf] %vm122, %v254
  // Predicated region
  $region22: #{t5_encoder_forward.9} parent=0 // pred_check
    _
  $region23: #{t5_encoder_forward.9} parent=0 // pred_check_branch
    %260 = sbr.rel (0) target = $region25
  $region24: #{t5_encoder_forward.9} parent=0 // pred_region
    _
  $region25: #{t5_encoder_forward.9} parent=0 // pred_fallthru
    _
  // Predicated region
  $region26: #{t5_encoder_forward.9} parent=0 // pred_check
    _
  $region27: #{t5_encoder_forward.9} parent=0 // pred_check_branch
    %262 = sbr.rel (0) target = $region29
  $region28: #{t5_encoder_forward.9} parent=0 // pred_region
    _
  $region29: #{t5_encoder_forward.9} parent=0 // pred_fallthru
    _
  // Predicated region
  $region30: #{t5_encoder_forward.9} parent=0 // pred_check
    _
  $region31: #{t5_encoder_forward.9} parent=0 // pred_check_branch
    %264 = sbr.rel (0) target = $region33
  $region32: #{t5_encoder_forward.9} parent=0 // pred_region
    _
  $region33: #{t5_encoder_forward.9} parent=0 // pred_fallthru
    _
  // Predicated region
  $region34: #{t5_encoder_forward.9} parent=0 // pred_check
    _
  $region35: #{t5_encoder_forward.9} parent=0 // pred_check_branch
    %266 = sbr.rel (0) target = $region37
  $region36: #{t5_encoder_forward.9} parent=0 // pred_region
    _
  $region37: #{t5_encoder_forward.9} parent=0 // pred_fallthru
    _
  // Predicated region
  $region38: #{t5_encoder_forward.9} parent=0 // pred_check
    _
  $region39: #{t5_encoder_forward.9} parent=0 // pred_check_branch
    %268 = sbr.rel (0) target = $region41
  $region40: #{t5_encoder_forward.9} parent=0 // pred_region
    _
  $region41: #{t5_encoder_forward.9} parent=0 // pred_fallthru
    _
  // Predicated region
  $region42: #{t5_encoder_forward.9} parent=0 // pred_check
    _
  $region43: #{t5_encoder_forward.9} parent=0 // pred_check_branch
    %270 = sbr.rel (0) target = $region45
  $region44: #{t5_encoder_forward.9} parent=0 // pred_region
    _
  $region45: #{t5_encoder_forward.9} parent=0 // pred_fallthru
    _

// kernel: t5_encoder_forward.12
$region0: #{t5_encoder_forward.12}
  #allocation0 [shape = 'u32[]', space=smem, size = 0x4, offset = 0x4, fixed_abs, tag = 'smem constant byte address 0x4 - core index']
  #allocation1 [shape = 'u32[144,128]{1,0:T(1,128)}', space=vmem, size = 0x12000, scoped, tag = 'internal scratch']
  #allocation2 [shape = 'f32[16,32]{1,0:T(8,128)}', space=vmem, size = 0x2000, scoped, tag = 'scratch operand']
  %s0 = inlined_call_operand.vmem [shape: f32[16,32], index: 0, kind: input, shape index: {}, may-alias: {0,4}]
  %s1 = inlined_call_operand.vmem [shape: f32[1,32], index: 1, kind: input, shape index: {}]
  %s2 = inlined_call_operand.vmem [shape: bf16[32,64], index: 2, kind: input, shape index: {}]
  %s3 = inlined_call_operand.vmem [shape: bf16[64,32], index: 3, kind: input, shape index: {}]
  %s4 = inlined_call_operand.vmem [shape: f32[16,32], index: 4, kind: output, shape index: {}, may-alias: {0,4}]
  %s5 = sld [smem:[#allocation0]]
  $region34: #{t5_encoder_forward.12} parent=0
    _
  %s7 = ssub.s32 1, %s5
  %s8 = scalar_select 0, %s7, %s5
  // Predicated region
  $region2: #{t5_encoder_forward.12} parent=0 // pred_check
    _
  $region3: #{t5_encoder_forward.12} parent=0 // pred_check_branch
    %10 = sbr.rel (0) target = $region5
  $region4: #{t5_encoder_forward.12} parent=0 // pred_region
    _
  $region5: #{t5_encoder_forward.12} parent=0 // pred_fallthru
    _
  // Predicated region
  $region6: #{t5_encoder_forward.12} parent=0 // pred_check
    _
  $region7: #{t5_encoder_forward.12} parent=0 // pred_check_branch
    %12 = sbr.rel (0) target = $region9
  $region8: #{t5_encoder_forward.12} parent=0 // pred_region
    _
  $region9: #{t5_encoder_forward.12} parent=0 // pred_fallthru
    _
  // Predicated region
  $region10: #{t5_encoder_forward.12} parent=0 // pred_check
    _
  $region11: #{t5_encoder_forward.12} parent=0 // pred_check_branch
    %14 = sbr.rel (0) target = $region13
  $region12: #{t5_encoder_forward.12} parent=0 // pred_region
    _
  $region13: #{t5_encoder_forward.12} parent=0 // pred_fallthru
    _
  // Predicated region
  $region14: #{t5_encoder_forward.12} parent=0 // pred_check
    _
  $region15: #{t5_encoder_forward.12} parent=0 // pred_check_branch
    %16 = sbr.rel (0) target = $region17
  $region16: #{t5_encoder_forward.12} parent=0 // pred_region
    _
  $region17: #{t5_encoder_forward.12} parent=0 // pred_fallthru
    _
  %p18 = scmp.eq.s32.totalorder 0, 0
  // Predicated region
  $region18: #{t5_encoder_forward.12} parent=0 // pred_check
    %p19 = pneg %p18
  $region19: #{t5_encoder_forward.12} parent=0 // pred_check_branch
    %21 = sbr.rel (%p19) target = $region21
  $region20: #{t5_encoder_forward.12} parent=0 // pred_region
    %vm22 = vcmask 261120
    %23 = vst.msk [vmem:[#allocation2] sm:$0xff] %vm22, 0.0
    %24 = vst.msk [vmem:[#allocation2 + $0x8] sm:$0xff] %vm22, 0.0
  $region21: #{t5_encoder_forward.12} parent=0 // pred_fallthru
    _
  %v25 = vld [vmem:[%s0] sm:$0xff]
  %v26 = vld [vmem:[%s0 + $0x8] sm:$0xff]
  %v27 = vmul.f32 %v25, %v25
  %v28 = vmul.f32 %v26, %v26
  %vm29 = vcmask 261120
  %v30 = vsel %vm29, %v27, 0.0
  %31 = vadd.xlane.f32.xlu0 %v30
  %v32 = vpop.xlane.xlu0 %31
  %v33 = vsel %vm29, %v28, 0.0
  %34 = vadd.xlane.f32.xlu0 %v33
  %v35 = vpop.xlane.xlu0 %34
  %v36 = vrcp.pop 32.0
  %v37 = vmul.f32 %v32, %v36
  %v38 = vmul.f32 %v35, %v36
  %v39 = vadd.f32 %v37, 1e-06
  %v40 = vadd.f32 %v38, 1e-06
  %v41 = vrsqrt.pop %v39
  %v42 = vrsqrt.pop %v40
  %v43 = vmul.f32 %v25, %v41
  %v44 = vmul.f32 %v26, %v42
  %v45 = vld [vmem:[%s1] sm:$0x1]
  %v47 = vlaneseq
  %v48 = vshrl.u32 %v47, 7
  %v49 = vsub.s32 0, %v48
  %v50 = vrot.slane %v45, %v49
  %v52 = vmul.f32 %v43, %v50
  %v53 = vmul.f32 %v44, %v50
  %v54 = vpack.c.bf16 %v53, %v52
  %v55 = vld [vmem:[%s2] sm:$0xf]
  %v56 = vld [vmem:[%s2 + $0x4] sm:$0xf]
  %v57 = vld [vmem:[%s2 + $0x8] sm:$0xf]
  %v58 = vld [vmem:[%s2 + $0xc] sm:$0xf]
  %v63 = vunpack.c.l.b16 %v55
  %v64 = vunpack.c.l.b16 %v56
  %v65 = vunpack.c.l.b16 %v57
  %v66 = vunpack.c.l.b16 %v58
  %v67 = vpack.c.b16 %v64, %v63
  %v68 = vpack.c.b16 %v66, %v65
  %v72 = vsel %vm29, %v54, 0
  %74 = vmatprep.subr.bf16.mxu0 0
  %75 = vmatpush1.bf16.msra.mxu0 %v67
  %76 = vmatprep.subr.bf16.mxu0 0
  %77 = vmatpush1.bf16.msra.mxu0 %v68
  %78 = vmatprep.subr.bf16.mxu0 0
  %79 = vmatpush1.bf16.msra.mxu0 0
  %80 = vmatprep.subr.bf16.mxu0 0
  %81 = vmatpush1.bf16.msra.mxu0 0
  %82 = vmatprep.subr.bf16.mxu0 0
  %83 = vmatpush1.bf16.msra.mxu0 0
  %84 = vmatprep.subr.bf16.mxu0 0
  %85 = vmatpush1.bf16.msra.mxu0 0
  %86 = vmatprep.subr.bf16.mxu0 0
  %87 = vmatpush1.bf16.msra.mxu0 0
  %88 = vmatprep.subr.bf16.mxu0 0
  %89 = vmatpush1.bf16.msra.mxu0 0
  %90 = vmatprep.subr.bf16.mxu0 0
  %91 = vmatpush1.bf16.msra.mxu0 0
  %92 = vmatprep.subr.bf16.mxu0 0
  %93 = vmatpush1.bf16.msra.mxu0 0
  %94 = vmatprep.subr.bf16.mxu0 0
  %95 = vmatpush1.bf16.msra.mxu0 0
  %96 = vmatprep.subr.bf16.mxu0 0
  %97 = vmatpush1.bf16.msra.mxu0 0
  %98 = vmatprep.subr.bf16.mxu0 0
  %99 = vmatpush1.bf16.msra.mxu0 0
  %100 = vmatprep.subr.bf16.mxu0 0
  %101 = vmatpush1.bf16.msra.mxu0 0
  %102 = vmatprep.subr.bf16.mxu0 0
  %103 = vmatpush1.bf16.msra.mxu0 0
  %104 = vmatprep.subr.bf16.mxu0 0
  %105 = vmatpush1.bf16.msra.mxu0 0
  %106 = vmatprep.mubr.bf16.mxu0 0
  %107 = vmatmul.mubr.bf16.gmra.mrb[0].mxu0 %v72
  %v108 = vpop.f32.mrb[0].mxu0
  %v109 = vadd.f32 0.0, %v108
  %v110 = vpop.f32.mrb[0].mxu0
  %v111 = vpop.f32.mrb[0].mxu0
  %v112 = vadd.f32 0.0, %v111
  %v113 = vpop.f32.mrb[0].mxu0
  %114 = vdwg.mxu0
  %v115 = vmax.f32 %v109, 0.0
  %v116 = vmax.f32 %v112, 0.0
  %v117 = vld [vmem:[#allocation2] sm:$0xff]
  %v118 = vld [vmem:[#allocation2 + $0x8] sm:$0xff]
  %v119 = vpack.c.bf16 %v116, %v115
  %v120 = vld [vmem:[%s3] sm:$0xf]
  %v121 = vld [vmem:[%s3 + $0x4] sm:$0xf]
  %v122 = vld [vmem:[%s3 + $0x8] sm:$0xf]
  %v123 = vld [vmem:[%s3 + $0xc] sm:$0xf]
  %v124 = vld [vmem:[%s3 + $0x10] sm:$0xf]
  %v125 = vld [vmem:[%s3 + $0x14] sm:$0xf]
  %v126 = vld [vmem:[%s3 + $0x18] sm:$0xf]
  %v127 = vld [vmem:[%s3 + $0x1c] sm:$0xf]
  %v136 = vunpack.c.l.b16 %v120
  %v137 = vunpack.c.l.b16 %v121
  %v138 = vunpack.c.l.b16 %v122
  %v139 = vunpack.c.l.b16 %v123
  %v140 = vunpack.c.l.b16 %v124
  %v141 = vunpack.c.l.b16 %v125
  %v142 = vunpack.c.l.b16 %v126
  %v143 = vunpack.c.l.b16 %v127
  %v144 = vpack.c.b16 %v137, %v136
  %v145 = vpack.c.b16 %v139, %v138
  %v146 = vpack.c.b16 %v141, %v140
  %v147 = vpack.c.b16 %v143, %v142
  %vm152 = vcmask 523264
  %v154 = vsel %vm152, %v119, 0
  %156 = vmatprep.subr.bf16.mxu0 0
  %157 = vmatpush1.bf16.msra.mxu0 %v144
  %158 = vmatprep.subr.bf16.mxu0 0
  %159 = vmatpush1.bf16.msra.mxu0 %v145
  %160 = vmatprep.subr.bf16.mxu0 0
  %161 = vmatpush1.bf16.msra.mxu0 %v146
  %162 = vmatprep.subr.bf16.mxu0 0
  %163 = vmatpush1.bf16.msra.mxu0 %v147
  %164 = vmatprep.subr.bf16.mxu0 0
  %165 = vmatpush1.bf16.msra.mxu0 0
  %166 = vmatprep.subr.bf16.mxu0 0
  %167 = vmatpush1.bf16.msra.mxu0 0
  %168 = vmatprep.subr.bf16.mxu0 0
  %169 = vmatpush1.bf16.msra.mxu0 0
  %170 = vmatprep.subr.bf16.mxu0 0
  %171 = vmatpush1.bf16.msra.mxu0 0
  %172 = vmatprep.subr.bf16.mxu0 0
  %173 = vmatpush1.bf16.msra.mxu0 0
  %174 = vmatprep.subr.bf16.mxu0 0
  %175 = vmatpush1.bf16.msra.mxu0 0
  %176 = vmatprep.subr.bf16.mxu0 0
  %177 = vmatpush1.bf16.msra.mxu0 0
  %178 = vmatprep.subr.bf16.mxu0 0
  %179 = vmatpush1.bf16.msra.mxu0 0
  %180 = vmatprep.subr.bf16.mxu0 0
  %181 = vmatpush1.bf16.msra.mxu0 0
  %182 = vmatprep.subr.bf16.mxu0 0
  %183 = vmatpush1.bf16.msra.mxu0 0
  %184 = vmatprep.subr.bf16.mxu0 0
  %185 = vmatpush1.bf16.msra.mxu0 0
  %186 = vmatprep.subr.bf16.mxu0 0
  %187 = vmatpush1.bf16.msra.mxu0 0
  %188 = vmatprep.mubr.bf16.mxu0 0
  %189 = vmatmul.mubr.bf16.gmra.mrb[0].mxu0 %v154
  %v190 = vpop.f32.mrb[0].mxu0
  %v191 = vadd.f32 0.0, %v190
  %v192 = vpop.f32.mrb[0].mxu0
  %v193 = vpop.f32.mrb[0].mxu0
  %v194 = vadd.f32 0.0, %v193
  %v195 = vpop.f32.mrb[0].mxu0
  %196 = vdwg.mxu0
  %v197 = vadd.f32 %v117, %v191
  %v198 = vadd.f32 %v118, %v194
  %199 = vst.msk [vmem:[#allocation2] sm:$0xff] %vm29, %v197
  %200 = vst.msk [vmem:[#allocation2 + $0x8] sm:$0xff] %vm29, %v198
  // Predicated region
  $region22: #{t5_encoder_forward.12} parent=0 // pred_check
    %p201 = pneg %p18
  $region23: #{t5_encoder_forward.12} parent=0 // pred_check_branch
    %203 = sbr.rel (%p201) target = $region25
  $region24: #{t5_encoder_forward.12} parent=0 // pred_region
    %v204 = vld [vmem:[#allocation2] sm:$0xff]
    %v205 = vld [vmem:[#allocation2 + $0x8] sm:$0xff]
    %v206 = vadd.f32 %v204, %v25
    %v207 = vadd.f32 %v205, %v26
    %208 = vst.msk [vmem:[%s4] sm:$0xff] %vm29, %v206
    %209 = vst.msk [vmem:[%s4 + $0x8] sm:$0xff] %vm29, %v207
  $region25: #{t5_encoder_forward.12} parent=0 // pred_fallthru
    _
  // Predicated region
  $region26: #{t5_encoder_forward.12} parent=0 // pred_check
    _
  $region27: #{t5_encoder_forward.12} parent=0 // pred_check_branch
    %211 = sbr.rel (0) target = $region29
  $region28: #{t5_encoder_forward.12} parent=0 // pred_region
    _
  $region29: #{t5_encoder_forward.12} parent=0 // pred_fallthru
    _
  // Predicated region
  $region30: #{t5_encoder_forward.12} parent=0 // pred_check
    _
  $region31: #{t5_encoder_forward.12} parent=0 // pred_check_branch
    %213 = sbr.rel (0) target = $region33
  $region32: #{t5_encoder_forward.12} parent=0 // pred_region
    _
  $region33: #{t5_encoder_forward.12} parent=0 // pred_fallthru
    _

// kernel: t5_encoder_forward.10
$region0: #{t5_encoder_forward.10}
  #allocation0 [shape = 'u32[]', space=smem, size = 0x4, offset = 0x4, fixed_abs, tag = 'smem constant byte address 0x4 - core index']
  #allocation1 [shape = 'u32[144,128]{1,0:T(1,128)}', space=vmem, size = 0x12000, scoped, tag = 'internal scratch']
  #allocation2 [shape = 'f32[4,8,1]{2,1,0:T(8,128)}', space=vmem, size = 0x4000, scoped, tag = 'scratch operand']
  #allocation3 [shape = 'f32[4,8,1]{2,1,0:T(8,128)}', space=vmem, size = 0x4000, scoped, tag = 'scratch operand']
  #allocation4 [shape = 'f32[4,8,8]{2,1,0:T(8,128)}', space=vmem, size = 0x4000, scoped, tag = 'scratch operand']
  %s0 = inlined_call_operand.vmem [shape: bf16[2,8,32], index: 0, kind: input, shape index: {}]
  %s1 = inlined_call_operand.vmem [shape: bf16[2,8,32], index: 1, kind: input, shape index: {}]
  %s2 = inlined_call_operand.vmem [shape: bf16[2,8,32], index: 2, kind: input, shape index: {}]
  %s3 = inlined_call_operand.vmem [shape: bf16[4,8,8], index: 3, kind: input, shape index: {}]
  %s4 = inlined_call_operand.vmem [shape: bf16[2,1,8], index: 4, kind: input, shape index: {}]
  %s5 = inlined_call_operand.vmem [shape: bf16[2,8,32], index: 5, kind: output, shape index: {}]
  %s6 = sld [smem:[#allocation0]]
  $region61: #{t5_encoder_forward.10} parent=0
    _
  %s8 = ssub.s32 1, %s6
  %s9 = scalar_select 0, %s8, %s6
  loop: start=0, step=1, limit=4
  $region2: #{t5_encoder_forward.10} parent=0 // loop_pre_header
    _
  $region3: #{t5_encoder_forward.10} parent=0 // loop_header
    %s11 = sphi 0, %s15
    %p12 = scmp.ge.s32.totalorder %s11, 4
    %s18 = sphi 0, %s37
    %s19 = sphi 0, %s33
    %s20 = sphi 0, %s29
    %s21 = sphi 0, %s18
    %s22 = sphi 0, %s19
    %s23 = sphi 0, %s20
    %s24 = sphi 0, %s21
    %s25 = sphi 0, %s22
    %s26 = sphi 0, %s23
    %s42 = sphi 0, %s44
    %s45 = sphi 0, %s42
    %s46 = sphi 0, %s45
    %s62 = sphi 0, %s46
    %s70 = sphi 0, %s72
    %s73 = sphi 0, %s70
    %s74 = sphi 0, %s73
    %s90 = sphi 0, %s74
    %s98 = sphi 0, %s100
    %s101 = sphi 0, %s98
    %s102 = sphi 0, %s101
    %s118 = sphi 0, %s102
    %s126 = sphi 0, %s128
    %s129 = sphi 0, %s126
    %s130 = sphi 0, %s129
    %s146 = sphi 0, %s130
    %s154 = sphi 0, %s156
    %s157 = sphi 0, %s154
    %s158 = sphi 0, %s157
    %s174 = sphi 0, %s158
    %s182 = sphi 0, %s184
    %s185 = sphi 0, %s182
    %s186 = sphi 0, %s185
    %s202 = sphi 0, %s186
  $region4: #{t5_encoder_forward.10} parent=0 // loop_header_branch
    %14 = sbr.rel (%p12) target = $region8
  $region5: #{t5_encoder_forward.10} parent=0 // loop_body
    %s16 = ssub.s32 %s11, 1
    %s17 = ssub.s32 %s11, 2
    %s27 = sadd.s32 1, %s20
    %p28 = scmp.ge.s32.totalorder %s27, 1
    %s29 = scalar_select %p28, 0, %s27
    %s30 = sadd.s32 1, %s19
    %s31 = scalar_select %p28, %s30, %s19
    %p32 = scmp.ge.s32.totalorder %s31, 1
    %s33 = scalar_select %p32, 0, %s31
    %s34 = sadd.s32 1, %s18
    %s35 = scalar_select %p32, %s34, %s18
    %p36 = scmp.ge.s32.totalorder %s35, 2
    %s37 = scalar_select %p36, 0, %s35
    %s38 = ssub.s32 %s18, %s37
    %s39 = ssub.s32 %s19, %s33
    %s40 = sor.u32 %s38, %s39
    %p41 = scmp.eq.s32.totalorder %s40, 0
    %s43 = sadd.s32 %s42, 1
    %s44 = scalar_select %p41, %s42, %s43
    %p47 = pneg %p41
    %p48 = scmp.eq.s32.totalorder %s11, 1
    %p49 = por %p47, %p48
    %p50 = scmp.ne.s32.totalorder %s42, %s45
    %p51 = scmp.eq.s32.totalorder %s11, 0
    %p52 = por %p50, %p51
    %p53 = scmp.ne.s32.totalorder %s42, %s45
    %p54 = scmp.eq.s32.totalorder %s16, 1
    %p55 = por %p53, %p54
    %p56 = scmp.ne.s32.totalorder %s45, %s46
    %p57 = scmp.eq.s32.totalorder %s16, 0
    %p58 = por %p56, %p57
    %p59 = scmp.ne.s32.totalorder %s45, %s46
    %p60 = scmp.eq.s32.totalorder %s17, 1
    %p61 = por %p59, %p60
    %p63 = scmp.ne.s32.totalorder %s46, %s62
    %p64 = scmp.eq.s32.totalorder %s17, 0
    %p65 = por %p63, %p64
    %s66 = ssub.s32 %s18, %s37
    %s67 = ssub.s32 %s20, %s29
    %s68 = sor.u32 %s66, %s67
    %p69 = scmp.eq.s32.totalorder %s68, 0
    %s71 = sadd.s32 %s70, 1
    %s72 = scalar_select %p69, %s70, %s71
    %p75 = pneg %p69
    %p76 = scmp.eq.s32.totalorder %s11, 1
    %p77 = por %p75, %p76
    %p78 = scmp.ne.s32.totalorder %s70, %s73
    %p79 = scmp.eq.s32.totalorder %s11, 0
    %p80 = por %p78, %p79
    %p81 = scmp.ne.s32.totalorder %s70, %s73
    %p82 = scmp.eq.s32.totalorder %s16, 1
    %p83 = por %p81, %p82
    %p84 = scmp.ne.s32.totalorder %s73, %s74
    %p85 = scmp.eq.s32.totalorder %s16, 0
    %p86 = por %p84, %p85
    %p87 = scmp.ne.s32.totalorder %s73, %s74
    %p88 = scmp.eq.s32.totalorder %s17, 1
    %p89 = por %p87, %p88
    %p91 = scmp.ne.s32.totalorder %s74, %s90
    %p92 = scmp.eq.s32.totalorder %s17, 0
    %p93 = por %p91, %p92
    %s94 = ssub.s32 %s18, %s37
    %s95 = ssub.s32 %s20, %s29
    %s96 = sor.u32 %s94, %s95
    %p97 = scmp.eq.s32.totalorder %s96, 0
    %s99 = sadd.s32 %s98, 1
    %s100 = scalar_select %p97, %s98, %s99
    %p103 = pneg %p97
    %p104 = scmp.eq.s32.totalorder %s11, 1
    %p105 = por %p103, %p104
    %p106 = scmp.ne.s32.totalorder %s98, %s101
    %p107 = scmp.eq.s32.totalorder %s11, 0
    %p108 = por %p106, %p107
    %p109 = scmp.ne.s32.totalorder %s98, %s101
    %p110 = scmp.eq.s32.totalorder %s16, 1
    %p111 = por %p109, %p110
    %p112 = scmp.ne.s32.totalorder %s101, %s102
    %p113 = scmp.eq.s32.totalorder %s16, 0
    %p114 = por %p112, %p113
    %p115 = scmp.ne.s32.totalorder %s101, %s102
    %p116 = scmp.eq.s32.totalorder %s17, 1
    %p117 = por %p115, %p116
    %p119 = scmp.ne.s32.totalorder %s102, %s118
    %p120 = scmp.eq.s32.totalorder %s17, 0
    %p121 = por %p119, %p120
    %s122 = ssub.s32 %s19, %s33
    %s123 = ssub.s32 %s20, %s29
    %s124 = sor.u32 %s122, %s123
    %p125 = scmp.eq.s32.totalorder %s124, 0
    %s127 = sadd.s32 %s126, 1
    %s128 = scalar_select %p125, %s126, %s127
    %p131 = pneg %p125
    %p132 = scmp.eq.s32.totalorder %s11, 1
    %p133 = por %p131, %p132
    %p134 = scmp.ne.s32.totalorder %s126, %s129
    %p135 = scmp.eq.s32.totalorder %s11, 0
    %p136 = por %p134, %p135
    %p137 = scmp.ne.s32.totalorder %s126, %s129
    %p138 = scmp.eq.s32.totalorder %s16, 1
    %p139 = por %p137, %p138
    %p140 = scmp.ne.s32.totalorder %s129, %s130
    %p141 = scmp.eq.s32.totalorder %s16, 0
    %p142 = por %p140, %p141
    %p143 = scmp.ne.s32.totalorder %s129, %s130
    %p144 = scmp.eq.s32.totalorder %s17, 1
    %p145 = por %p143, %p144
    %p147 = scmp.ne.s32.totalorder %s130, %s146
    %p148 = scmp.eq.s32.totalorder %s17, 0
    %p149 = por %p147, %p148
    %s150 = ssub.s32 %s18, %s37
    %s151 = ssub.s32 %s20, %s29
    %s152 = sor.u32 %s150, %s151
    %p153 = scmp.eq.s32.totalorder %s152, 0
    %s155 = sadd.s32 %s154, 1
    %s156 = scalar_select %p153, %s154, %s155
    %p159 = pneg %p153
    %p160 = scmp.eq.s32.totalorder %s11, 1
    %p161 = por %p159, %p160
    %p162 = scmp.ne.s32.totalorder %s154, %s157
    %p163 = scmp.eq.s32.totalorder %s11, 0
    %p164 = por %p162, %p163
    %p165 = scmp.ne.s32.totalorder %s154, %s157
    %p166 = scmp.eq.s32.totalorder %s16, 1
    %p167 = por %p165, %p166
    %p168 = scmp.ne.s32.totalorder %s157, %s158
    %p169 = scmp.eq.s32.totalorder %s16, 0
    %p170 = por %p168, %p169
    %p171 = scmp.ne.s32.totalorder %s157, %s158
    %p172 = scmp.eq.s32.totalorder %s17, 1
    %p173 = por %p171, %p172
    %p175 = scmp.ne.s32.totalorder %s158, %s174
    %p176 = scmp.eq.s32.totalorder %s17, 0
    %p177 = por %p175, %p176
    %s178 = ssub.s32 %s18, %s37
    %s179 = ssub.s32 %s19, %s33
    %s180 = sor.u32 %s178, %s179
    %p181 = scmp.eq.s32.totalorder %s180, 0
    %s183 = sadd.s32 %s182, 1
    %s184 = scalar_select %p181, %s182, %s183
    %p187 = pneg %p181
    %p188 = scmp.eq.s32.totalorder %s11, 1
    %p189 = por %p187, %p188
    %p190 = scmp.ne.s32.totalorder %s182, %s185
    %p191 = scmp.eq.s32.totalorder %s11, 0
    %p192 = por %p190, %p191
    %p193 = scmp.ne.s32.totalorder %s182, %s185
    %p194 = scmp.eq.s32.totalorder %s16, 1
    %p195 = por %p193, %p194
    %p196 = scmp.ne.s32.totalorder %s185, %s186
    %p197 = scmp.eq.s32.totalorder %s16, 0
    %p198 = por %p196, %p197
    %p199 = scmp.ne.s32.totalorder %s185, %s186
    %p200 = scmp.eq.s32.totalorder %s17, 1
    %p201 = por %p199, %p200
    %p203 = scmp.ne.s32.totalorder %s186, %s202
    %p204 = scmp.eq.s32.totalorder %s17, 0
    %p205 = por %p203, %p204
    %p206 = scmp.le.s32.totalorder 1, %s11
    %p207 = scmp.lt.s32.totalorder %s11, 3
    %p208 = pnand %p206, %p207
    %p209 = pneg %p208
    // Predicated region
    $region9: #{t5_encoder_forward.10} parent=5 // pred_check
      _
    $region10: #{t5_encoder_forward.10} parent=5 // pred_check_branch
      %211 = sbr.rel (%p208) target = $region12
    $region11: #{t5_encoder_forward.10} parent=5 // pred_region
      %s212 = ssub.s32 %s11, 1
      // Predicated region
      $region13: #{t5_encoder_forward.10} parent=11 // pred_check
        %p213 = pneg %p142
      $region14: #{t5_encoder_forward.10} parent=11 // pred_check_branch
        %215 = sbr.rel (%p213) target = $region16
      $region15: #{t5_encoder_forward.10} parent=11 // pred_region
        %p216 = scmp.lt.s32.totalorder %s22, 0
        %s217 = scalar_select %p216, %s22, 0
        %p218 = scmp.lt.s32.totalorder %s23, 0
        %s219 = scalar_select %p218, %s23, 0
        %s220 = sadd.s32 %s219, %s217
        %s221 = smul.addr %s220, 4
        %s222 = scalar_lea.vmem %s3, %s221
      $region16: #{t5_encoder_forward.10} parent=11 // pred_fallthru
        _
    $region12: #{t5_encoder_forward.10} parent=5 // pred_fallthru
      _
    %p223 = scmp.lt.s32.totalorder %s11, 2
    // Predicated region
    $region17: #{t5_encoder_forward.10} parent=5 // pred_check
      %p224 = pneg %p223
    $region18: #{t5_encoder_forward.10} parent=5 // pred_check_branch
      %226 = sbr.rel (%p224) target = $region20
    $region19: #{t5_encoder_forward.10} parent=5 // pred_region
      // Predicated region
      $region21: #{t5_encoder_forward.10} parent=19 // pred_check
        %p227 = pneg %p52
      $region22: #{t5_encoder_forward.10} parent=19 // pred_check_branch
        %229 = sbr.rel (%p227) target = $region24
      $region23: #{t5_encoder_forward.10} parent=19 // pred_region
        %p230 = scmp.lt.s32.totalorder %s18, 1
        %s231 = scalar_select %p230, %s18, 1
        %p232 = scmp.lt.s32.totalorder %s19, 0
        %s233 = scalar_select %p232, %s19, 0
        %s234 = sadd.s32 %s233, %s231
        %s235 = smul.addr %s234, 4
        %s236 = scalar_lea.vmem %s0, %s235
      $region24: #{t5_encoder_forward.10} parent=19 // pred_fallthru
        _
      // Predicated region
      $region25: #{t5_encoder_forward.10} parent=19 // pred_check
        %p237 = pneg %p80
      $region26: #{t5_encoder_forward.10} parent=19 // pred_check_branch
        %239 = sbr.rel (%p237) target = $region28
      $region27: #{t5_encoder_forward.10} parent=19 // pred_region
        %p240 = scmp.lt.s32.totalorder %s18, 1
        %s241 = scalar_select %p240, %s18, 1
        %p242 = scmp.lt.s32.totalorder %s20, 0
        %s243 = scalar_select %p242, %s20, 0
        %s244 = sadd.s32 %s243, %s241
        %s245 = smul.addr %s244, 4
        %s246 = scalar_lea.vmem %s1, %s245
      $region28: #{t5_encoder_forward.10} parent=19 // pred_fallthru
        _
      // Predicated region
      $region29: #{t5_encoder_forward.10} parent=19 // pred_check
        %p247 = pneg %p108
      $region30: #{t5_encoder_forward.10} parent=19 // pred_check_branch
        %249 = sbr.rel (%p247) target = $region32
      $region31: #{t5_encoder_forward.10} parent=19 // pred_region
        %p250 = scmp.lt.s32.totalorder %s18, 1
        %s251 = scalar_select %p250, %s18, 1
        %p252 = scmp.lt.s32.totalorder %s20, 0
        %s253 = scalar_select %p252, %s20, 0
        %s254 = sadd.s32 %s253, %s251
        %s255 = smul.addr %s254, 4
        %s256 = scalar_lea.vmem %s2, %s255
      $region32: #{t5_encoder_forward.10} parent=19 // pred_fallthru
        _
      // Predicated region
      $region33: #{t5_encoder_forward.10} parent=19 // pred_check
        %p257 = pneg %p164
      $region34: #{t5_encoder_forward.10} parent=19 // pred_check_branch
        %259 = sbr.rel (%p257) target = $region36
      $region35: #{t5_encoder_forward.10} parent=19 // pred_region
        %p260 = scmp.lt.s32.totalorder %s18, 1
        %s261 = scalar_select %p260, %s18, 1
        %p262 = scmp.lt.s32.totalorder %s20, 0
        %s263 = scalar_select %p262, %s20, 0
        %s264 = sadd.s32 %s263, %s261
        %s265 = scalar_lea.vmem %s4, %s264
      $region36: #{t5_encoder_forward.10} parent=19 // pred_fallthru
        _
    $region20: #{t5_encoder_forward.10} parent=5 // pred_fallthru
      _
    %p266 = scmp.le.s32.totalorder 1, %s11
    %p267 = scmp.lt.s32.totalorder %s11, 3
    %p268 = pnand %p266, %p267
    %p269 = pneg %p268
    // Predicated region
    $region37: #{t5_encoder_forward.10} parent=5 // pred_check
      _
    $region38: #{t5_encoder_forward.10} parent=5 // pred_check_branch
      %271 = sbr.rel (%p268) target = $region40
    $region39: #{t5_encoder_forward.10} parent=5 // pred_region
      %s272 = ssub.s32 %s11, 1
      %p273 = scmp.lt.s32.totalorder %s21, 1
      %s274 = scalar_select %p273, %s21, 1
      %p275 = scmp.lt.s32.totalorder %s22, 0
      %s276 = scalar_select %p275, %s22, 0
      %s277 = sadd.s32 %s276, %s274
      %s278 = smul.addr %s277, 4
      %s279 = scalar_lea.vmem %s0, %s278
      %p280 = pneg %p58
      %p281 = pneg %p55
      %p282 = scmp.lt.s32.totalorder %s21, 1
      %s283 = scalar_select %p282, %s21, 1
      %p284 = scmp.lt.s32.totalorder %s23, 0
      %s285 = scalar_select %p284, %s23, 0
      %s286 = sadd.s32 %s285, %s283
      %s287 = smul.addr %s286, 4
      %s288 = scalar_lea.vmem %s1, %s287
      %p289 = pneg %p86
      %p290 = pneg %p83
      %p291 = scmp.lt.s32.totalorder %s21, 1
      %s292 = scalar_select %p291, %s21, 1
      %p293 = scmp.lt.s32.totalorder %s23, 0
      %s294 = scalar_select %p293, %s23, 0
      %s295 = sadd.s32 %s294, %s292
      %s296 = smul.addr %s295, 4
      %s297 = scalar_lea.vmem %s2, %s296
      %p298 = pneg %p114
      %p299 = pneg %p111
      %p300 = scmp.lt.s32.totalorder %s22, 0
      %s301 = scalar_select %p300, %s22, 0
      %p302 = scmp.lt.s32.totalorder %s23, 0
      %s303 = scalar_select %p302, %s23, 0
      %s304 = sadd.s32 %s303, %s301
      %s305 = smul.addr %s304, 4
      %s306 = scalar_lea.vmem %s3, %s305
      %p307 = pneg %p142
      %p308 = pneg %p139
      %p309 = scmp.lt.s32.totalorder %s21, 1
      %s310 = scalar_select %p309, %s21, 1
      %p311 = scmp.lt.s32.totalorder %s23, 0
      %s312 = scalar_select %p311, %s23, 0
      %s313 = sadd.s32 %s312, %s310
      %s314 = scalar_lea.vmem %s4, %s313
      %p315 = pneg %p170
      %p316 = pneg %p167
      %p317 = pneg %p198
      %p318 = pneg %p195
      %p319 = scmp.lt.s32.totalorder %s21, 1
      %s320 = scalar_select %p319, %s21, 1
      %p321 = scmp.lt.s32.totalorder %s22, 0
      %s322 = scalar_select %p321, %s22, 0
      %s323 = sadd.s32 %s322, %s320
      %s324 = smul.addr %s323, 4
      %s325 = scalar_lea.vmem %s5, %s324
      %p326 = scmp.lt.s32.totalorder %s21, 1
      %s327 = scalar_select %p326, %s21, 1
      %p328 = scmp.lt.s32.totalorder %s22, 0
      %s329 = scalar_select %p328, %s22, 0
      %s330 = sadd.s32 %s329, %s327
      %s331 = smul.addr %s330, 4
      %s332 = scalar_lea.vmem %s0, %s331
      %p333 = scmp.lt.s32.totalorder %s21, 1
      %s334 = scalar_select %p333, %s21, 1
      %p335 = scmp.lt.s32.totalorder %s23, 0
      %s336 = scalar_select %p335, %s23, 0
      %s337 = sadd.s32 %s336, %s334
      %s338 = smul.addr %s337, 4
      %s339 = scalar_lea.vmem %s1, %s338
      %p340 = scmp.lt.s32.totalorder %s21, 1
      %s341 = scalar_select %p340, %s21, 1
      %p342 = scmp.lt.s32.totalorder %s23, 0
      %s343 = scalar_select %p342, %s23, 0
      %s344 = sadd.s32 %s343, %s341
      %s345 = smul.addr %s344, 4
      %s346 = scalar_lea.vmem %s2, %s345
      %p347 = scmp.lt.s32.totalorder %s22, 0
      %s348 = scalar_select %p347, %s22, 0
      %p349 = scmp.lt.s32.totalorder %s23, 0
      %s350 = scalar_select %p349, %s23, 0
      %s351 = sadd.s32 %s350, %s348
      %s352 = smul.addr %s351, 4
      %s353 = scalar_lea.vmem %s3, %s352
      %p354 = scmp.lt.s32.totalorder %s21, 1
      %s355 = scalar_select %p354, %s21, 1
      %p356 = scmp.lt.s32.totalorder %s23, 0
      %s357 = scalar_select %p356, %s23, 0
      %s358 = sadd.s32 %s357, %s355
      %s359 = scalar_lea.vmem %s4, %s358
      %p360 = scmp.lt.s32.totalorder %s21, 1
      %s361 = scalar_select %p360, %s21, 1
      %p362 = scmp.lt.s32.totalorder %s22, 0
      %s363 = scalar_select %p362, %s22, 0
      %s364 = sadd.s32 %s363, %s361
      %s365 = smul.addr %s364, 4
      %s366 = scalar_lea.vmem %s5, %s365
      %p368 = scmp.eq.s32.totalorder %s23, 0
      // Predicated region
      $region41: #{t5_encoder_forward.10} parent=39 // pred_check
        %p369 = pneg %p368
      $region42: #{t5_encoder_forward.10} parent=39 // pred_check_branch
        %371 = sbr.rel (%p369) target = $region44
      $region43: #{t5_encoder_forward.10} parent=39 // pred_region
        %vm372 = vcmask 7168
        %373 = vst.msk [vmem:[#allocation2] sm:$0xff] %vm372, -1e+30
        %374 = vst.msk [vmem:[#allocation2 + $0x8] sm:$0xff] %vm372, -1e+30
        %375 = vst.msk [vmem:[#allocation2 + $0x10] sm:$0xff] %vm372, -1e+30
        %376 = vst.msk [vmem:[#allocation2 + $0x18] sm:$0xff] %vm372, -1e+30
        %377 = vst.msk [vmem:[#allocation3] sm:$0xff] %vm372, 0.0
        %378 = vst.msk [vmem:[#allocation3 + $0x8] sm:$0xff] %vm372, 0.0
        %379 = vst.msk [vmem:[#allocation3 + $0x10] sm:$0xff] %vm372, 0.0
        %380 = vst.msk [vmem:[#allocation3 + $0x18] sm:$0xff] %vm372, 0.0
        %vm381 = vcmask 64512
        %382 = vst.msk [vmem:[#allocation4] sm:$0xff] %vm381, 0.0
        %383 = vst.msk [vmem:[#allocation4 + $0x8] sm:$0xff] %vm381, 0.0
        %384 = vst.msk [vmem:[#allocation4 + $0x10] sm:$0xff] %vm381, 0.0
        %385 = vst.msk [vmem:[#allocation4 + $0x18] sm:$0xff] %vm381, 0.0
      $region44: #{t5_encoder_forward.10} parent=39 // pred_fallthru
        _
      %v386 = vld [vmem:[%s332] sm:$0xf]
      %v387 = vld [vmem:[%s339] sm:$0xf]
      %v388 = vld [vmem:[%s346] sm:$0xf]
      %v389 = vld [vmem:[%s359] sm:$0x1]
      %v390 = vunpack.c.l.bf16 %v389
      %v391 = vld [vmem:[%s353] sm:$0xf]
      %v392 = vunpack.c.l.bf16 %v391
      %vm393 = vcmask 64512
      %v395 = vsel %vm393, %v386, 0
      %v398 = vsel %vm393, %v387, 0
      %400 = vmatprep.subr.bf16.mxu0 0
      %401 = vmatpush1.bf16.xpose.msra.mxu0 %v398
      %402 = vmatprep.subr.bf16.mxu0 0
      %403 = vmatpush1.bf16.xpose.msra.mxu0 0
      %404 = vmatprep.subr.bf16.mxu0 0
      %405 = vmatpush1.bf16.xpose.msra.mxu0 0
      %406 = vmatprep.subr.bf16.mxu0 0
      %407 = vmatpush1.bf16.xpose.msra.mxu0 0
      %408 = vmatprep.subr.bf16.mxu0 0
      %409 = vmatpush1.bf16.xpose.msra.mxu0 0
      %410 = vmatprep.subr.bf16.mxu0 0
      %411 = vmatpush1.bf16.xpose.msra.mxu0 0
      %412 = vmatprep.subr.bf16.mxu0 0
      %413 = vmatpush1.bf16.xpose.msra.mxu0 0
      %414 = vmatprep.subr.bf16.mxu0 0
      %415 = vmatpush1.bf16.xpose.msra.mxu0 0
      %416 = vmatprep.subr.bf16.mxu0 0
      %417 = vmatpush1.bf16.xpose.msra.mxu0 0
      %418 = vmatprep.subr.bf16.mxu0 0
      %419 = vmatpush1.bf16.xpose.msra.mxu0 0
      %420 = vmatprep.subr.bf16.mxu0 0
      %421 = vmatpush1.bf16.xpose.msra.mxu0 0
      %422 = vmatprep.subr.bf16.mxu0 0
      %423 = vmatpush1.bf16.xpose.msra.mxu0 0
      %424 = vmatprep.subr.bf16.mxu0 0
      %425 = vmatpush1.bf16.xpose.msra.mxu0 0
      %426 = vmatprep.subr.bf16.mxu0 0
      %427 = vmatpush1.bf16.xpose.msra.mxu0 0
      %428 = vmatprep.subr.bf16.mxu0 0
      %429 = vmatpush1.bf16.xpose.msra.mxu0 0
      %430 = vmatprep.subr.bf16.mxu0 0
      %431 = vmatpush1.bf16.xpose.msra.mxu0 0
      %432 = vmatprep.mubr.bf16.mxu0 0
      %433 = vmatmul.mubr.bf16.gmra.mrb[0].mxu0 %v395
      %v434 = vpop.f32.mrb[0].mxu0
      %v435 = vadd.f32 %v392, %v434
      %v436 = vpop.f32.mrb[0].mxu0
      %v437 = vpop.f32.mrb[0].mxu0
      %v438 = vpop.f32.mrb[0].mxu0
      %439 = vdwg.mxu0
      %v440 = vlaneseq
      %v441 = vshrl.u32 %v440, 7
      %v442 = vsub.s32 0, %v441
      %v443 = vrot.slane %v390, %v442
      %v444 = vadd.f32 %v435, %v443
      %v445 = vld [vmem:[#allocation2] sm:$0xff]
      %v446 = vsel %vm393, %v444, -inf
      %447 = vmax.xlane.f32.xlu0 %v446
      %v448 = vpop.xlane.xlu0 %447
      %v449 = vmax.f32 %v445, %v448
      %v450 = vsub.f32 %v445, %v449
      %v451 = vmul.f32 %v450, 1.442695
      %v452 = vpow.pop %v451
      %454 = vset.pattern.permute.xlu0 0
      %455 = vperm.xlu0 %454, %v449
      %v456 = vpop.permute.xlu0 %455
      %v458 = vsub.f32 %v444, %v456
      %v459 = vmul.f32 %v458, 1.442695
      %v460 = vpow.pop %v459
      %v461 = vld [vmem:[#allocation3] sm:$0xff]
      %v462 = vmul.f32 %v452, %v461
      %v463 = vsel %vm393, %v460, 0.0
      %464 = vadd.xlane.f32.xlu0 %v463
      %v465 = vpop.xlane.xlu0 %464
      %v466 = vadd.f32 %v462, %v465
      %vm467 = vcmask 7168
      %468 = vst.msk [vmem:[#allocation3] sm:$0xff] %vm467, %v466
      %v469 = vld [vmem:[#allocation4] sm:$0xff]
      %471 = vset.pattern.permute.xlu0 0
      %472 = vperm.xlu0 %471, %v452
      %v473 = vpop.permute.xlu0 %472
      %v475 = vmul.f32 %v473, %v469
      %v476 = vpack.c.bf16 %v460, %v460
      %v478 = vsel %vm393, %v476, 0
      %vm480 = vcmask 1043456
      %v482 = vsel %vm480, %v388, 0
      %484 = vmatprep.subr.bf16.mxu0 0
      %485 = vmatpush1.bf16.msra.mxu0 %v482
      %486 = vmatprep.subr.bf16.mxu0 0
      %487 = vmatpush1.bf16.msra.mxu0 0
      %488 = vmatprep.subr.bf16.mxu0 0
      %489 = vmatpush1.bf16.msra.mxu0 0
      %490 = vmatprep.subr.bf16.mxu0 0
      %491 = vmatpush1.bf16.msra.mxu0 0
      %492 = vmatprep.subr.bf16.mxu0 0
      %493 = vmatpush1.bf16.msra.mxu0 0
      %494 = vmatprep.subr.bf16.mxu0 0
      %495 = vmatpush1.bf16.msra.mxu0 0
      %496 = vmatprep.subr.bf16.mxu0 0
      %497 = vmatpush1.bf16.msra.mxu0 0
      %498 = vmatprep.subr.bf16.mxu0 0
      %499 = vmatpush1.bf16.msra.mxu0 0
      %500 = vmatprep.subr.bf16.mxu0 0
      %501 = vmatpush1.bf16.msra.mxu0 0
      %502 = vmatprep.subr.bf16.mxu0 0
      %503 = vmatpush1.bf16.msra.mxu0 0
      %504 = vmatprep.subr.bf16.mxu0 0
      %505 = vmatpush1.bf16.msra.mxu0 0
      %506 = vmatprep.subr.bf16.mxu0 0
      %507 = vmatpush1.bf16.msra.mxu0 0
      %508 = vmatprep.subr.bf16.mxu0 0
      %509 = vmatpush1.bf16.msra.mxu0 0
      %510 = vmatprep.subr.bf16.mxu0 0
      %511 = vmatpush1.bf16.msra.mxu0 0
      %512 = vmatprep.subr.bf16.mxu0 0
      %513 = vmatpush1.bf16.msra.mxu0 0
      %514 = vmatprep.subr.bf16.mxu0 0
      %515 = vmatpush1.bf16.msra.mxu0 0
      %516 = vmatprep.mubr.bf16.mxu0 0
      %517 = vmatmul.mubr.bf16.gmra.mrb[0].mxu0 %v478
      %v518 = vpop.f32.mrb[0].mxu0
      %v519 = vadd.f32 0.0, %v518
      %v520 = vpop.f32.mrb[0].mxu0
      %v521 = vpop.f32.mrb[0].mxu0
      %v522 = vpop.f32.mrb[0].mxu0
      %523 = vdwg.mxu0
      %v524 = vadd.f32 %v475, %v519
      %525 = vst.msk [vmem:[#allocation4] sm:$0xff] %vm393, %v524
      %526 = vst.msk [vmem:[#allocation2] sm:$0xff] %vm467, %v449
      %s527 = scalar_lea.vmem %s353, 4
      %v528 = vld [vmem:[%s527] sm:$0xf]
      %v529 = vunpack.c.l.bf16 %v528
      %v531 = vunpack.c.l.b16 %v386
      %v532 = vpack.c.b16 %v531, %v531
      %533 = vrot.lane.b32.xlu0 %v532, 120
      %v534 = vpop.permute.xlu0 %533
      %v536 = vunpack.c.l.b16 %v387
      %v537 = vpack.c.b16 %v536, %v536
      %538 = vrot.lane.b32.xlu0 %v537, 120
      %v539 = vpop.permute.xlu0 %538
      %v541 = vsel %vm393, %v534, 0
      %v544 = vsel %vm393, %v539, 0
      %546 = vmatprep.subr.bf16.mxu0 0
      %547 = vmatpush1.bf16.xpose.msra.mxu0 %v544
      %548 = vmatprep.subr.bf16.mxu0 0
      %549 = vmatpush1.bf16.xpose.msra.mxu0 0
      %550 = vmatprep.subr.bf16.mxu0 0
      %551 = vmatpush1.bf16.xpose.msra.mxu0 0
      %552 = vmatprep.subr.bf16.mxu0 0
      %553 = vmatpush1.bf16.xpose.msra.mxu0 0
      %554 = vmatprep.subr.bf16.mxu0 0
      %555 = vmatpush1.bf16.xpose.msra.mxu0 0
      %556 = vmatprep.subr.bf16.mxu0 0
      %557 = vmatpush1.bf16.xpose.msra.mxu0 0
      %558 = vmatprep.subr.bf16.mxu0 0
      %559 = vmatpush1.bf16.xpose.msra.mxu0 0
      %560 = vmatprep.subr.bf16.mxu0 0
      %561 = vmatpush1.bf16.xpose.msra.mxu0 0
      %562 = vmatprep.subr.bf16.mxu0 0
      %563 = vmatpush1.bf16.xpose.msra.mxu0 0
      %564 = vmatprep.subr.bf16.mxu0 0
      %565 = vmatpush1.bf16.xpose.msra.mxu0 0
      %566 = vmatprep.subr.bf16.mxu0 0
      %567 = vmatpush1.bf16.xpose.msra.mxu0 0
      %568 = vmatprep.subr.bf16.mxu0 0
      %569 = vmatpush1.bf16.xpose.msra.mxu0 0
      %570 = vmatprep.subr.bf16.mxu0 0
      %571 = vmatpush1.bf16.xpose.msra.mxu0 0
      %572 = vmatprep.subr.bf16.mxu0 0
      %573 = vmatpush1.bf16.xpose.msra.mxu0 0
      %574 = vmatprep.subr.bf16.mxu0 0
      %575 = vmatpush1.bf16.xpose.msra.mxu0 0
      %576 = vmatprep.subr.bf16.mxu0 0
      %577 = vmatpush1.bf16.xpose.msra.mxu0 0
      %578 = vmatprep.mubr.bf16.mxu0 0
      %579 = vmatmul.mubr.bf16.gmra.mrb[0].mxu0 %v541
      %v580 = vpop.f32.mrb[0].mxu0
      %v581 = vadd.f32 %v529, %v580
      %v582 = vpop.f32.mrb[0].mxu0
      %v583 = vpop.f32.mrb[0].mxu0
      %v584 = vpop.f32.mrb[0].mxu0
      %585 = vdwg.mxu0
      %v586 = vadd.f32 %v581, %v443
      %s587 = scalar_lea.vmem [#allocation2], 8
      %v588 = vld [vmem:[%s587] sm:$0xff]
      %v589 = vsel %vm393, %v586, -inf
      %590 = vmax.xlane.f32.xlu0 %v589
      %v591 = vpop.xlane.xlu0 %590
      %v592 = vmax.f32 %v588, %v591
      %v593 = vsub.f32 %v588, %v592
      %v594 = vmul.f32 %v593, 1.442695
      %v595 = vpow.pop %v594
      %597 = vset.pattern.permute.xlu0 0
      %598 = vperm.xlu0 %597, %v592
      %v599 = vpop.permute.xlu0 %598
      %v601 = vsub.f32 %v586, %v599
      %v602 = vmul.f32 %v601, 1.442695
      %v603 = vpow.pop %v602
      %s604 = scalar_lea.vmem [#allocation3], 8
      %v605 = vld [vmem:[%s604] sm:$0xff]
      %v606 = vmul.f32 %v595, %v605
      %v607 = vsel %vm393, %v603, 0.0
      %608 = vadd.xlane.f32.xlu0 %v607
      %v609 = vpop.xlane.xlu0 %608
      %v610 = vadd.f32 %v606, %v609
      %611 = vst.msk [vmem:[%s604] sm:$0xff] %vm467, %v610
      %s612 = scalar_lea.vmem [#allocation4], 8
      %v613 = vld [vmem:[%s612] sm:$0xff]
      %615 = vset.pattern.permute.xlu0 0
      %616 = vperm.xlu0 %615, %v595
      %v617 = vpop.permute.xlu0 %616
      %v619 = vmul.f32 %v617, %v613
      %v620 = vpack.c.bf16 %v603, %v603
      %v622 = vunpack.c.l.b16 %v388
      %v623 = vpack.c.b16 %v622, %v622
      %624 = vrot.lane.b32.xlu0 %v623, 120
      %v625 = vpop.permute.xlu0 %624
      %v627 = vsel %vm393, %v620, 0
      %v630 = vsel %vm480, %v625, 0
      %632 = vmatprep.subr.bf16.mxu0 0
      %633 = vmatpush1.bf16.msra.mxu0 %v630
      %634 = vmatprep.subr.bf16.mxu0 0
      %635 = vmatpush1.bf16.msra.mxu0 0
      %636 = vmatprep.subr.bf16.mxu0 0
      %637 = vmatpush1.bf16.msra.mxu0 0
      %638 = vmatprep.subr.bf16.mxu0 0
      %639 = vmatpush1.bf16.msra.mxu0 0
      %640 = vmatprep.subr.bf16.mxu0 0
      %641 = vmatpush1.bf16.msra.mxu0 0
      %642 = vmatprep.subr.bf16.mxu0 0
      %643 = vmatpush1.bf16.msra.mxu0 0
      %644 = vmatprep.subr.bf16.mxu0 0
      %645 = vmatpush1.bf16.msra.mxu0 0
      %646 = vmatprep.subr.bf16.mxu0 0
      %647 = vmatpush1.bf16.msra.mxu0 0
      %648 = vmatprep.subr.bf16.mxu0 0
      %649 = vmatpush1.bf16.msra.mxu0 0
      %650 = vmatprep.subr.bf16.mxu0 0
      %651 = vmatpush1.bf16.msra.mxu0 0
      %652 = vmatprep.subr.bf16.mxu0 0
      %653 = vmatpush1.bf16.msra.mxu0 0
      %654 = vmatprep.subr.bf16.mxu0 0
      %655 = vmatpush1.bf16.msra.mxu0 0
      %656 = vmatprep.subr.bf16.mxu0 0
      %657 = vmatpush1.bf16.msra.mxu0 0
      %658 = vmatprep.subr.bf16.mxu0 0
      %659 = vmatpush1.bf16.msra.mxu0 0
      %660 = vmatprep.subr.bf16.mxu0 0
      %661 = vmatpush1.bf16.msra.mxu0 0
      %662 = vmatprep.subr.bf16.mxu0 0
      %663 = vmatpush1.bf16.msra.mxu0 0
      %664 = vmatprep.mubr.bf16.mxu0 0
      %665 = vmatmul.mubr.bf16.gmra.mrb[0].mxu0 %v627
      %v666 = vpop.f32.mrb[0].mxu0
      %v667 = vadd.f32 0.0, %v666
      %v668 = vpop.f32.mrb[0].mxu0
      %v669 = vpop.f32.mrb[0].mxu0
      %v670 = vpop.f32.mrb[0].mxu0
      %671 = vdwg.mxu0
      %v672 = vadd.f32 %v619, %v667
      %673 = vst.msk [vmem:[%s612] sm:$0xff] %vm393, %v672
      %674 = vst.msk [vmem:[%s587] sm:$0xff] %vm467, %v592
      %s675 = scalar_lea.vmem %s353, 8
      %v676 = vld [vmem:[%s675] sm:$0xf]
      %v677 = vunpack.c.l.bf16 %v676
      %678 = vrot.lane.b32.xlu0 %v532, 112
      %v679 = vpop.permute.xlu0 %678
      %680 = vrot.lane.b32.xlu0 %v537, 112
      %v681 = vpop.permute.xlu0 %680
      %v683 = vsel %vm393, %v679, 0
      %v686 = vsel %vm393, %v681, 0
      %688 = vmatprep.subr.bf16.mxu0 0
      %689 = vmatpush1.bf16.xpose.msra.mxu0 %v686
      %690 = vmatprep.subr.bf16.mxu0 0
      %691 = vmatpush1.bf16.xpose.msra.mxu0 0
      %692 = vmatprep.subr.bf16.mxu0 0
      %693 = vmatpush1.bf16.xpose.msra.mxu0 0
      %694 = vmatprep.subr.bf16.mxu0 0
      %695 = vmatpush1.bf16.xpose.msra.mxu0 0
      %696 = vmatprep.subr.bf16.mxu0 0
      %697 = vmatpush1.bf16.xpose.msra.mxu0 0
      %698 = vmatprep.subr.bf16.mxu0 0
      %699 = vmatpush1.bf16.xpose.msra.mxu0 0
      %700 = vmatprep.subr.bf16.mxu0 0
      %701 = vmatpush1.bf16.xpose.msra.mxu0 0
      %702 = vmatprep.subr.bf16.mxu0 0
      %703 = vmatpush1.bf16.xpose.msra.mxu0 0
      %704 = vmatprep.subr.bf16.mxu0 0
      %705 = vmatpush1.bf16.xpose.msra.mxu0 0
      %706 = vmatprep.subr.bf16.mxu0 0
      %707 = vmatpush1.bf16.xpose.msra.mxu0 0
      %708 = vmatprep.subr.bf16.mxu0 0
      %709 = vmatpush1.bf16.xpose.msra.mxu0 0
      %710 = vmatprep.subr.bf16.mxu0 0
      %711 = vmatpush1.bf16.xpose.msra.mxu0 0
      %712 = vmatprep.subr.bf16.mxu0 0
      %713 = vmatpush1.bf16.xpose.msra.mxu0 0
      %714 = vmatprep.subr.bf16.mxu0 0
      %715 = vmatpush1.bf16.xpose.msra.mxu0 0
      %716 = vmatprep.subr.bf16.mxu0 0
      %717 = vmatpush1.bf16.xpose.msra.mxu0 0
      %718 = vmatprep.subr.bf16.mxu0 0
      %719 = vmatpush1.bf16.xpose.msra.mxu0 0
      %720 = vmatprep.mubr.bf16.mxu0 0
      %721 = vmatmul.mubr.bf16.gmra.mrb[0].mxu0 %v683
      %v722 = vpop.f32.mrb[0].mxu0
      %v723 = vadd.f32 %v677, %v722
      %v724 = vpop.f32.mrb[0].mxu0
      %v725 = vpop.f32.mrb[0].mxu0
      %v726 = vpop.f32.mrb[0].mxu0
      %727 = vdwg.mxu0
      %v728 = vadd.f32 %v723, %v443
      %s729 = scalar_lea.vmem [#allocation2], 16
      %v730 = vld [vmem:[%s729] sm:$0xff]
      %v731 = vsel %vm393, %v728, -inf
      %732 = vmax.xlane.f32.xlu0 %v731
      %v733 = vpop.xlane.xlu0 %732
      %v734 = vmax.f32 %v730, %v733
      %v735 = vsub.f32 %v730, %v734
      %v736 = vmul.f32 %v735, 1.442695
      %v737 = vpow.pop %v736
      %739 = vset.pattern.permute.xlu0 0
      %740 = vperm.xlu0 %739, %v734
      %v741 = vpop.permute.xlu0 %740
      %v743 = vsub.f32 %v728, %v741
      %v744 = vmul.f32 %v743, 1.442695
      %v745 = vpow.pop %v744
      %s746 = scalar_lea.vmem [#allocation3], 16
      %v747 = vld [vmem:[%s746] sm:$0xff]
      %v748 = vmul.f32 %v737, %v747
      %v749 = vsel %vm393, %v745, 0.0
      %750 = vadd.xlane.f32.xlu0 %v749
      %v751 = vpop.xlane.xlu0 %750
      %v752 = vadd.f32 %v748, %v751
      %753 = vst.msk [vmem:[%s746] sm:$0xff] %vm467, %v752
      %s754 = scalar_lea.vmem [#allocation4], 16
      %v755 = vld [vmem:[%s754] sm:$0xff]
      %757 = vset.pattern.permute.xlu0 0
      %758 = vperm.xlu0 %757, %v737
      %v759 = vpop.permute.xlu0 %758
      %v761 = vmul.f32 %v759, %v755
      %v762 = vpack.c.bf16 %v745, %v745
      %763 = vrot.lane.b32.xlu0 %v623, 112
      %v764 = vpop.permute.xlu0 %763
      %v766 = vsel %vm393, %v762, 0
      %v769 = vsel %vm480, %v764, 0
      %771 = vmatprep.subr.bf16.mxu0 0
      %772 = vmatpush1.bf16.msra.mxu0 %v769
      %773 = vmatprep.subr.bf16.mxu0 0
      %774 = vmatpush1.bf16.msra.mxu0 0
      %775 = vmatprep.subr.bf16.mxu0 0
      %776 = vmatpush1.bf16.msra.mxu0 0
      %777 = vmatprep.subr.bf16.mxu0 0
      %778 = vmatpush1.bf16.msra.mxu0 0
      %779 = vmatprep.subr.bf16.mxu0 0
      %780 = vmatpush1.bf16.msra.mxu0 0
      %781 = vmatprep.subr.bf16.mxu0 0
      %782 = vmatpush1.bf16.msra.mxu0 0
      %783 = vmatprep.subr.bf16.mxu0 0
      %784 = vmatpush1.bf16.msra.mxu0 0
      %785 = vmatprep.subr.bf16.mxu0 0
      %786 = vmatpush1.bf16.msra.mxu0 0
      %787 = vmatprep.subr.bf16.mxu0 0
      %788 = vmatpush1.bf16.msra.mxu0 0
      %789 = vmatprep.subr.bf16.mxu0 0
      %790 = vmatpush1.bf16.msra.mxu0 0
      %791 = vmatprep.subr.bf16.mxu0 0
      %792 = vmatpush1.bf16.msra.mxu0 0
      %793 = vmatprep.subr.bf16.mxu0 0
      %794 = vmatpush1.bf16.msra.mxu0 0
      %795 = vmatprep.subr.bf16.mxu0 0
      %796 = vmatpush1.bf16.msra.mxu0 0
      %797 = vmatprep.subr.bf16.mxu0 0
      %798 = vmatpush1.bf16.msra.mxu0 0
      %799 = vmatprep.subr.bf16.mxu0 0
      %800 = vmatpush1.bf16.msra.mxu0 0
      %801 = vmatprep.subr.bf16.mxu0 0
      %802 = vmatpush1.bf16.msra.mxu0 0
      %803 = vmatprep.mubr.bf16.mxu0 0
      %804 = vmatmul.mubr.bf16.gmra.mrb[0].mxu0 %v766
      %v805 = vpop.f32.mrb[0].mxu0
      %v806 = vadd.f32 0.0, %v805
      %v807 = vpop.f32.mrb[0].mxu0
      %v808 = vpop.f32.mrb[0].mxu0
      %v809 = vpop.f32.mrb[0].mxu0
      %810 = vdwg.mxu0
      %v811 = vadd.f32 %v761, %v806
      %812 = vst.msk [vmem:[%s754] sm:$0xff] %vm393, %v811
      %813 = vst.msk [vmem:[%s729] sm:$0xff] %vm467, %v734
      %s814 = scalar_lea.vmem %s353, 12
      %v815 = vld [vmem:[%s814] sm:$0xf]
      %v816 = vunpack.c.l.bf16 %v815
      %817 = vrot.lane.b32.xlu0 %v532, 104
      %v818 = vpop.permute.xlu0 %817
      %819 = vrot.lane.b32.xlu0 %v537, 104
      %v820 = vpop.permute.xlu0 %819
      %v822 = vsel %vm393, %v818, 0
      %v825 = vsel %vm393, %v820, 0
      %827 = vmatprep.subr.bf16.mxu0 0
      %828 = vmatpush1.bf16.xpose.msra.mxu0 %v825
      %829 = vmatprep.subr.bf16.mxu0 0
      %830 = vmatpush1.bf16.xpose.msra.mxu0 0
      %831 = vmatprep.subr.bf16.mxu0 0
      %832 = vmatpush1.bf16.xpose.msra.mxu0 0
      %833 = vmatprep.subr.bf16.mxu0 0
      %834 = vmatpush1.bf16.xpose.msra.mxu0 0
      %835 = vmatprep.subr.bf16.mxu0 0
      %836 = vmatpush1.bf16.xpose.msra.mxu0 0
      %837 = vmatprep.subr.bf16.mxu0 0
      %838 = vmatpush1.bf16.xpose.msra.mxu0 0
      %839 = vmatprep.subr.bf16.mxu0 0
      %840 = vmatpush1.bf16.xpose.msra.mxu0 0
      %841 = vmatprep.subr.bf16.mxu0 0
      %842 = vmatpush1.bf16.xpose.msra.mxu0 0
      %843 = vmatprep.subr.bf16.mxu0 0
      %844 = vmatpush1.bf16.xpose.msra.mxu0 0
      %845 = vmatprep.subr.bf16.mxu0 0
      %846 = vmatpush1.bf16.xpose.msra.mxu0 0
      %847 = vmatprep.subr.bf16.mxu0 0
      %848 = vmatpush1.bf16.xpose.msra.mxu0 0
      %849 = vmatprep.subr.bf16.mxu0 0
      %850 = vmatpush1.bf16.xpose.msra.mxu0 0
      %851 = vmatprep.subr.bf16.mxu0 0
      %852 = vmatpush1.bf16.xpose.msra.mxu0 0
      %853 = vmatprep.subr.bf16.mxu0 0
      %854 = vmatpush1.bf16.xpose.msra.mxu0 0
      %855 = vmatprep.subr.bf16.mxu0 0
      %856 = vmatpush1.bf16.xpose.msra.mxu0 0
      %857 = vmatprep.subr.bf16.mxu0 0
      %858 = vmatpush1.bf16.xpose.msra.mxu0 0
      %859 = vmatprep.mubr.bf16.mxu0 0
      %860 = vmatmul.mubr.bf16.gmra.mrb[0].mxu0 %v822
      %v861 = vpop.f32.mrb[0].mxu0
      %v862 = vadd.f32 %v816, %v861
      %v863 = vpop.f32.mrb[0].mxu0
      %v864 = vpop.f32.mrb[0].mxu0
      %v865 = vpop.f32.mrb[0].mxu0
      %866 = vdwg.mxu0
      %v867 = vadd.f32 %v862, %v443
      %s868 = scalar_lea.vmem [#allocation2], 24
      %v869 = vld [vmem:[%s868] sm:$0xff]
      %v870 = vsel %vm393, %v867, -inf
      %871 = vmax.xlane.f32.xlu0 %v870
      %v872 = vpop.xlane.xlu0 %871
      %v873 = vmax.f32 %v869, %v872
      %v874 = vsub.f32 %v869, %v873
      %v875 = vmul.f32 %v874, 1.442695
      %v876 = vpow.pop %v875
      %878 = vset.pattern.permute.xlu0 0
      %879 = vperm.xlu0 %878, %v873
      %v880 = vpop.permute.xlu0 %879
      %v882 = vsub.f32 %v867, %v880
      %v883 = vmul.f32 %v882, 1.442695
      %v884 = vpow.pop %v883
      %s885 = scalar_lea.vmem [#allocation3], 24
      %v886 = vld [vmem:[%s885] sm:$0xff]
      %v887 = vmul.f32 %v876, %v886
      %v888 = vsel %vm393, %v884, 0.0
      %889 = vadd.xlane.f32.xlu0 %v888
      %v890 = vpop.xlane.xlu0 %889
      %v891 = vadd.f32 %v887, %v890
      %892 = vst.msk [vmem:[%s885] sm:$0xff] %vm467, %v891
      %s893 = scalar_lea.vmem [#allocation4], 24
      %v894 = vld [vmem:[%s893] sm:$0xff]
      %896 = vset.pattern.permute.xlu0 0
      %897 = vperm.xlu0 %896, %v876
      %v898 = vpop.permute.xlu0 %897
      %v900 = vmul.f32 %v898, %v894
      %v901 = vpack.c.bf16 %v884, %v884
      %902 = vrot.lane.b32.xlu0 %v623, 104
      %v903 = vpop.permute.xlu0 %902
      %v905 = vsel %vm393, %v901, 0
      %v908 = vsel %vm480, %v903, 0
      %910 = vmatprep.subr.bf16.mxu0 0
      %911 = vmatpush1.bf16.msra.mxu0 %v908
      %912 = vmatprep.subr.bf16.mxu0 0
      %913 = vmatpush1.bf16.msra.mxu0 0
      %914 = vmatprep.subr.bf16.mxu0 0
      %915 = vmatpush1.bf16.msra.mxu0 0
      %916 = vmatprep.subr.bf16.mxu0 0
      %917 = vmatpush1.bf16.msra.mxu0 0
      %918 = vmatprep.subr.bf16.mxu0 0
      %919 = vmatpush1.bf16.msra.mxu0 0
      %920 = vmatprep.subr.bf16.mxu0 0
      %921 = vmatpush1.bf16.msra.mxu0 0
      %922 = vmatprep.subr.bf16.mxu0 0
      %923 = vmatpush1.bf16.msra.mxu0 0
      %924 = vmatprep.subr.bf16.mxu0 0
      %925 = vmatpush1.bf16.msra.mxu0 0
      %926 = vmatprep.subr.bf16.mxu0 0
      %927 = vmatpush1.bf16.msra.mxu0 0
      %928 = vmatprep.subr.bf16.mxu0 0
      %929 = vmatpush1.bf16.msra.mxu0 0
      %930 = vmatprep.subr.bf16.mxu0 0
      %931 = vmatpush1.bf16.msra.mxu0 0
      %932 = vmatprep.subr.bf16.mxu0 0
      %933 = vmatpush1.bf16.msra.mxu0 0
      %934 = vmatprep.subr.bf16.mxu0 0
      %935 = vmatpush1.bf16.msra.mxu0 0
      %936 = vmatprep.subr.bf16.mxu0 0
      %937 = vmatpush1.bf16.msra.mxu0 0
      %938 = vmatprep.subr.bf16.mxu0 0
      %939 = vmatpush1.bf16.msra.mxu0 0
      %940 = vmatprep.subr.bf16.mxu0 0
      %941 = vmatpush1.bf16.msra.mxu0 0
      %942 = vmatprep.mubr.bf16.mxu0 0
      %943 = vmatmul.mubr.bf16.gmra.mrb[0].mxu0 %v905
      %v944 = vpop.f32.mrb[0].mxu0
      %v945 = vadd.f32 0.0, %v944
      %v946 = vpop.f32.mrb[0].mxu0
      %v947 = vpop.f32.mrb[0].mxu0
      %v948 = vpop.f32.mrb[0].mxu0
      %949 = vdwg.mxu0
      %v950 = vadd.f32 %v900, %v945
      %951 = vst.msk [vmem:[%s893] sm:$0xff] %vm393, %v950
      %952 = vst.msk [vmem:[%s868] sm:$0xff] %vm467, %v873
      // Predicated region
      $region45: #{t5_encoder_forward.10} parent=39 // pred_check
        %p953 = pneg %p368
      $region46: #{t5_encoder_forward.10} parent=39 // pred_check_branch
        %955 = sbr.rel (%p953) target = $region48
      $region47: #{t5_encoder_forward.10} parent=39 // pred_region
        %v956 = vld [vmem:[#allocation3] sm:$0xff]
        %v957 = vrcp.pop %v956
        %v958 = vld [vmem:[#allocation4] sm:$0xff]
        %960 = vset.pattern.permute.xlu0 0
        %961 = vperm.xlu0 %960, %v957
        %v962 = vpop.permute.xlu0 %961
        %v964 = vmul.f32 %v958, %v962
        %v965 = vld [vmem:[%s604] sm:$0xff]
        %v966 = vrcp.pop %v965
        %v967 = vld [vmem:[%s612] sm:$0xff]
        %969 = vset.pattern.permute.xlu0 0
        %970 = vperm.xlu0 %969, %v966
        %v971 = vpop.permute.xlu0 %970
        %v973 = vmul.f32 %v967, %v971
        %v974 = vld [vmem:[%s746] sm:$0xff]
        %v975 = vrcp.pop %v974
        %v976 = vld [vmem:[%s754] sm:$0xff]
        %978 = vset.pattern.permute.xlu0 0
        %979 = vperm.xlu0 %978, %v975
        %v980 = vpop.permute.xlu0 %979
        %v982 = vmul.f32 %v976, %v980
        %v983 = vld [vmem:[%s885] sm:$0xff]
        %v984 = vrcp.pop %v983
        %v985 = vld [vmem:[%s893] sm:$0xff]
        %987 = vset.pattern.permute.xlu0 0
        %988 = vperm.xlu0 %987, %v984
        %v989 = vpop.permute.xlu0 %988
        %v991 = vmul.f32 %v985, %v989
        %993 = vrot.lane.b32.xlu0 %v973, 8
        %v994 = vpop.permute.xlu0 %993
        %997 = vrot.lane.b32.xlu0 %v982, 16
        %v998 = vpop.permute.xlu0 %997
        %1001 = vrot.lane.b32.xlu0 %v991, 24
        %v1002 = vpop.permute.xlu0 %1001
        %v1004 = vsel %vm393, %v964, %v994
        %vm1005 = vcmask 130048
        %v1006 = vsel %vm1005, %v1004, %v998
        %vm1007 = vcmask 195584
        %v1008 = vsel %vm1007, %v1006, %v1002
        %v1009 = vpack.c.bf16 %v1008, %v1008
        %vm1010 = vcmask 257024
        %1011 = vst.msk [vmem:[%s366] sm:$0xf] %vm1010, %v1009
      $region48: #{t5_encoder_forward.10} parent=39 // pred_fallthru
        _
      %p1012 = scmp.lt.s32.totalorder %s21, 1
      %s1013 = scalar_select %p1012, %s21, 1
      %p1014 = scmp.lt.s32.totalorder %s22, 0
      %s1015 = scalar_select %p1014, %s22, 0
      %s1016 = sadd.s32 %s1015, %s1013
      %s1017 = smul.addr %s1016, 4
      %s1018 = scalar_lea.vmem %s5, %s1017
      // Predicated region
      $region49: #{t5_encoder_forward.10} parent=39 // pred_check
        %p1019 = pneg %p195
      $region50: #{t5_encoder_forward.10} parent=39 // pred_check_branch
        %1021 = sbr.rel (%p1019) target = $region52
      $region51: #{t5_encoder_forward.10} parent=39 // pred_region
        _
      $region52: #{t5_encoder_forward.10} parent=39 // pred_fallthru
        _
    $region40: #{t5_encoder_forward.10} parent=5 // pred_fallthru
      _
    %p1022 = scmp.le.s32.totalorder 2, %s11
    // Predicated region
    $region53: #{t5_encoder_forward.10} parent=5 // pred_check
      %p1023 = pneg %p1022
    $region54: #{t5_encoder_forward.10} parent=5 // pred_check_branch
      %1025 = sbr.rel (%p1023) target = $region56
    $region55: #{t5_encoder_forward.10} parent=5 // pred_region
      %s1026 = ssub.s32 %s11, 2
      // Predicated region
      $region57: #{t5_encoder_forward.10} parent=55 // pred_check
        %p1027 = pneg %p201
      $region58: #{t5_encoder_forward.10} parent=55 // pred_check_branch
        %1029 = sbr.rel (%p1027) target = $region60
      $region59: #{t5_encoder_forward.10} parent=55 // pred_region
        %p1030 = scmp.lt.s32.totalorder %s24, 1
        %s1031 = scalar_select %p1030, %s24, 1
        %p1032 = scmp.lt.s32.totalorder %s25, 0
        %s1033 = scalar_select %p1032, %s25, 0
        %s1034 = sadd.s32 %s1033, %s1031
        %s1035 = smul.addr %s1034, 4
        %s1036 = scalar_lea.vmem %s5, %s1035
      $region60: #{t5_encoder_forward.10} parent=55 // pred_fallthru
        _
    $region56: #{t5_encoder_forward.10} parent=5 // pred_fallthru
      _
  $region6: #{t5_encoder_forward.10} parent=0 // loop_footer
    %s15 = sadd.s32 1, %s11
  $region7: #{t5_encoder_forward.10} parent=0 // loop_footer_branch
    %10 = sbr.rel target = $region3
  $region8: #{t5_encoder_forward.10} parent=0 // loop_exit
    _

// kernel: t5_encoder_forward.17
$region0: #{t5_encoder_forward.17}
  #allocation0 [shape = 'u32[]', space=smem, size = 0x4, offset = 0x4, fixed_abs, tag = 'smem constant byte address 0x4 - core index']
  #allocation1 [shape = 'u32[144,128]{1,0:T(1,128)}', space=vmem, size = 0x12000, scoped, tag = 'internal scratch']
  %s0 = inlined_call_operand.vmem [shape: f32[16,32], index: 0, kind: input, shape index: {}]
  %s1 = inlined_call_operand.vmem [shape: f32[1,32], index: 1, kind: input, shape index: {}]
  %s2 = inlined_call_operand.hbm [shape: f32[16,32], index: 2, kind: output, shape index: {}]
  %s3 = sld [smem:[#allocation0]]
  $region18: #{t5_encoder_forward.17} parent=0
    _
  %s5 = ssub.s32 1, %s3
  %s6 = scalar_select 0, %s5, %s3
  $region1: #{t5_encoder_forward.17} parent=0
    #allocation2 [shape = 'u8[8192]{0}', space=vmem, size = 0x2000, scoped, tag = 'output window, operand 0, single buffered']
    #allocation3 [shape = 's32[1]{0}', space=sflag, size = 0x4, scoped, tag = 'scoped memory for t5_encoder_forward.17']
    %7 = vsyncpa [#allocation3], 0
    // Predicated region
    $region2: #{t5_encoder_forward.17} parent=1 // pred_check
      _
    $region3: #{t5_encoder_forward.17} parent=1 // pred_check_branch
      %9 = sbr.rel (0) target = $region5
    $region4: #{t5_encoder_forward.17} parent=1 // pred_region
      _
    $region5: #{t5_encoder_forward.17} parent=1 // pred_fallthru
      _
    // Predicated region
    $region6: #{t5_encoder_forward.17} parent=1 // pred_check
      _
    $region7: #{t5_encoder_forward.17} parent=1 // pred_check_branch
      %11 = sbr.rel (0) target = $region9
    $region8: #{t5_encoder_forward.17} parent=1 // pred_region
      _
    $region9: #{t5_encoder_forward.17} parent=1 // pred_fallthru
      _
    %v12 = vld [vmem:[%s0] sm:$0xff]
    %v13 = vld [vmem:[%s0 + $0x8] sm:$0xff]
    %v14 = vmul.f32 %v12, %v12
    %v15 = vmul.f32 %v13, %v13
    %vm16 = vcmask 261120
    %v17 = vsel %vm16, %v14, 0.0
    %18 = vadd.xlane.f32.xlu0 %v17
    %v19 = vpop.xlane.xlu0 %18
    %v20 = vsel %vm16, %v15, 0.0
    %21 = vadd.xlane.f32.xlu0 %v20
    %v22 = vpop.xlane.xlu0 %21
    %v23 = vrcp.pop 32.0
    %v24 = vmul.f32 %v19, %v23
    %v25 = vmul.f32 %v22, %v23
    %v26 = vadd.f32 %v24, 1e-06
    %v27 = vadd.f32 %v25, 1e-06
    %v28 = vrsqrt.pop %v26
    %v29 = vrsqrt.pop %v27
    %v30 = vmul.f32 %v12, %v28
    %v31 = vmul.f32 %v13, %v29
    %v32 = vld [vmem:[%s1] sm:$0x1]
    %v34 = vlaneseq
    %v35 = vshrl.u32 %v34, 7
    %v36 = vsub.s32 0, %v35
    %v37 = vrot.slane %v32, %v36
    %v39 = vmul.f32 %v30, %v37
    %v40 = vmul.f32 %v31, %v37
    %41 = vst.msk [vmem:[#allocation2] sm:$0xff] %vm16, %v39
    %42 = vst.msk [vmem:[#allocation2 + $0x8] sm:$0xff] %vm16, %v40
    // Predicated region
    $region10: #{t5_encoder_forward.17} parent=1 // pred_check
      _
    $region11: #{t5_encoder_forward.17} parent=1 // pred_check_branch
      %44 = sbr.rel (0) target = $region13
    $region12: #{t5_encoder_forward.17} parent=1 // pred_region
      %s46 = ssub.s32 256, 256
      %47 = vsyncadd [#allocation3], %s46
      %s48 = sshll.u32 [#allocation2], 4
      %s49 = int_to_ptr.vmem [resolvable:$true] %s48
      %54 = dma.vmem_to_hbm [thread:$0]  %s49, 256, %s2, [#allocation3], 128, 128, 8
    $region13: #{t5_encoder_forward.17} parent=1 // pred_fallthru
      _
    // Predicated region
    $region14: #{t5_encoder_forward.17} parent=1 // pred_check
      _
    $region15: #{t5_encoder_forward.17} parent=1 // pred_check_branch
      %56 = sbr.rel (0) target = $region17
    $region16: #{t5_encoder_forward.17} parent=1 // pred_region
      %57 = dma.done [#allocation3], 256
    $region17: #{t5_encoder_forward.17} parent=1 // pred_fallthru
      _
    %58 = vsyncpa [#allocation3], 1

</llo_original>
